<compile_context>
chip_gen: v7x
topology: tpu7x:2x2x1
jax: 0.10.0
libtpu: 0.0.40
codegen_flags: <defaults>
</compile_context>

<pallas_src>
import jax
import jax.numpy as jnp
from jax.experimental import pallas as pl
from jax.experimental.pallas import tpu as pltpu

LEAKY_SLOPE = 0.2
BN_EPS = 1e-5


def _leaky(x):
    return jnp.where(x >= 0, x, LEAKY_SLOPE * x)


def _pick_hw_tile(hw, n_batch, cap=2048):
    """Largest multiple-of-128 divisor of hw up to `cap` (full extent if hw is
    not lane-aligned).  Tries to keep total grid length >= 2 for megacore."""
    if hw % 128 != 0:
        return hw                      # full-extent block (allowed)
    t = (min(cap, hw) // 128) * 128
    while hw % t != 0:
        t -= 128
    if n_batch == 1 and t == hw and hw % 256 == 0:
        t = hw // 2                    # keep >= 2 grid steps when batch == 1
    return t


# ---------------------------------------------------------------------------
# Stage 1 (stats-only): h1 = leaky(W1^T x + b1); h2 = W2^T h1; accumulate
# per-channel sum / sum-of-squares of h2 into resident (per-batch) outputs.
# ---------------------------------------------------------------------------
def stats_kernel(x_ref, w1t_ref, b1_ref, w2t_ref, sum_ref, ssq_ref):
    x = x_ref[0].astype(jnp.bfloat16)                                  # (C, T)
    h1 = jnp.dot(w1t_ref[...], x, preferred_element_type=jnp.float32) + b1_ref[...]
    h1 = _leaky(h1)                                                    # (ndf, T) f32
    h2 = jnp.dot(w2t_ref[...], h1.astype(jnp.bfloat16),
                 preferred_element_type=jnp.float32)                   # (2*ndf, T) f32

    ps = jnp.sum(h2, axis=1, keepdims=True)[None]                      # (1, 2*ndf, 1)
    pq = jnp.sum(h2 * h2, axis=1, keepdims=True)[None]

    @pl.when(pl.program_id(1) == 0)
    def _init():
        sum_ref[...] = jnp.zeros_like(sum_ref)
        ssq_ref[...] = jnp.zeros_like(ssq_ref)

    sum_ref[...] += ps
    ssq_ref[...] += pq


# ---------------------------------------------------------------------------
# Stage 2: recompute h1/h2, apply folded BatchNorm (scale/shift) + LeakyReLU,
# final 1x1 conv to a single channel.  Output is lane-dense (1, 1, T).
# ---------------------------------------------------------------------------
def fwd_kernel(x_ref, w1t_ref, b1_ref, w2t_ref, scale_ref, shift_ref, w3t_ref, o_ref):
    x = x_ref[0].astype(jnp.bfloat16)                                  # (C, T)
    h1 = jnp.dot(w1t_ref[...], x, preferred_element_type=jnp.float32) + b1_ref[...]
    h1 = _leaky(h1)
    h2 = jnp.dot(w2t_ref[...], h1.astype(jnp.bfloat16),
                 preferred_element_type=jnp.float32)                   # (2*ndf, T)
    y = _leaky(h2 * scale_ref[...] + shift_ref[...])                   # folded BN
    o = jnp.dot(w3t_ref[...], y.astype(jnp.bfloat16),
                preferred_element_type=jnp.float32)                    # (1, T)
    o_ref[...] = o[None]                                               # (1, 1, T)


def pixel_discriminator_forward(x_nchw, params, *, hw_tile=None):
    """Forward pass. x_nchw: (N, C, H, W) float32 -> (N, 1, H, W) float32."""
    w1, b1, w2, gamma, beta, w3 = params
    N, C, H, W = x_nchw.shape
    ndf = w1.shape[1]
    nc2 = 2 * ndf
    HW = H * W
    P = N * HW

    T = _pick_hw_tile(HW, N) if hw_tile is None else hw_tile
    assert HW % T == 0
    grid = (N, HW // T)

    # NCHW kept; (N, C, HW) is a free reshape (no transpose / extra HBM pass).
    x3 = x_nchw.reshape(N, C, HW)

    # Weights pre-transposed to (out, in) and pre-cast to bf16 in the wrapper.
    w1t = jnp.transpose(w1).astype(jnp.bfloat16)       # (ndf, C)
    w2t = jnp.transpose(w2).astype(jnp.bfloat16)       # (2*ndf, ndf)
    w3t = jnp.transpose(w3).astype(jnp.bfloat16)       # (1, 2*ndf)
    b1c = b1.reshape(ndf, 1).astype(jnp.float32)       # f32 column

    full = lambda b, t: (0, 0)

    # ---- stage 1: BN statistics (no h2 materialization) --------------------
    psum, pssq = pl.pallas_call(
        stats_kernel,
        out_shape=(
            jax.ShapeDtypeStruct((N, nc2, 1), jnp.float32),
            jax.ShapeDtypeStruct((N, nc2, 1), jnp.float32),
        ),
        grid_spec=pltpu.PrefetchScalarGridSpec(
            num_scalar_prefetch=0,
            grid=grid,
            in_specs=[
                pl.BlockSpec((1, C, T), lambda b, t: (b, 0, t)),   # x tile
                pl.BlockSpec((ndf, C), full),                      # w1^T
                pl.BlockSpec((ndf, 1), full),                      # b1
                pl.BlockSpec((nc2, ndf), full),                    # w2^T
            ],
            out_specs=[
                pl.BlockSpec((1, nc2, 1), lambda b, t: (b, 0, 0)),  # per-batch sum
                pl.BlockSpec((1, nc2, 1), lambda b, t: (b, 0, 0)),  # per-batch ssq
            ],
        ),
        compiler_params=pltpu.CompilerParams(
            dimension_semantics=("parallel", "arbitrary")),
    )(x3, w1t, b1c, w2t)

    # Tiny glue (plain JAX): BatchNorm2d training-mode stats (biased variance),
    # then fold affine params into a single scale/shift FMA.
    mean = jnp.sum(psum, axis=0) / P                                   # (2*ndf, 1)
    var = jnp.maximum(jnp.sum(pssq, axis=0) / P - mean * mean, 0.0)
    inv_std = jax.lax.rsqrt(var + BN_EPS)
    scale = gamma.reshape(nc2, 1) * inv_std
    shift = beta.reshape(nc2, 1) - mean * scale

    # ---- stage 2: recompute + BN + LeakyReLU + final conv -------------------
    out3 = pl.pallas_call(
        fwd_kernel,
        out_shape=jax.ShapeDtypeStruct((N, 1, HW), jnp.float32),
        grid_spec=pltpu.PrefetchScalarGridSpec(
            num_scalar_prefetch=0,
            grid=grid,
            in_specs=[
                pl.BlockSpec((1, C, T), lambda b, t: (b, 0, t)),   # x tile
                pl.BlockSpec((ndf, C), full),                      # w1^T
                pl.BlockSpec((ndf, 1), full),                      # b1
                pl.BlockSpec((nc2, ndf), full),                    # w2^T
                pl.BlockSpec((nc2, 1), full),                      # BN scale
                pl.BlockSpec((nc2, 1), full),                      # BN shift
                pl.BlockSpec((1, nc2), full),                      # w3^T
            ],
            out_specs=pl.BlockSpec((1, 1, T), lambda b, t: (b, 0, t)),
        ),
        compiler_params=pltpu.CompilerParams(
            dimension_semantics=("parallel", "parallel")),
    )(x3, w1t, b1c, w2t, scale, shift, w3t)

    return out3.reshape(N, 1, H, W)


def reference_forward(x_nchw, params):
    """Pure-JAX f32 reference (mirrors the PyTorch module in training mode)."""
    w1, b1, w2, gamma, beta, w3 = params
    N, C, H, W = x_nchw.shape
    x = jnp.transpose(x_nchw, (0, 2, 3, 1)).reshape(-1, C)
    h1 = _leaky(x @ w1 + b1[None, :])
    h2 = h1 @ w2
    mean = jnp.mean(h2, axis=0, keepdims=True)
    var = jnp.mean((h2 - mean) ** 2, axis=0, keepdims=True)
    y = _leaky((h2 - mean) / jnp.sqrt(var + BN_EPS) * gamma[None, :] + beta[None, :])
    o = y @ w3
    return jnp.transpose(o.reshape(N, H, W, 1), (0, 3, 1, 2))


def init_params(key, input_nc, ndf):
    """Deterministic synthetic init (Conv2d 1x1 weights stored as (in, out))."""
    k1, k2, k3 = jax.random.split(key, 3)
    w1 = jax.random.normal(k1, (input_nc, ndf), jnp.float32) * 0.1
    b1 = jnp.linspace(-0.1, 0.1, ndf, dtype=jnp.float32)
    w2 = jax.random.normal(k2, (ndf, 2 * ndf), jnp.float32) * 0.1
    gamma = jnp.ones((2 * ndf,), jnp.float32)   # BatchNorm2d defaults
    beta = jnp.zeros((2 * ndf,), jnp.float32)
    w3 = jax.random.normal(k3, (2 * ndf, 1), jnp.float32) * 0.1
    return (w1, b1, w2, gamma, beta, w3)


if __name__ == "__main__":
    input_nc, ndf = 4, 64
    N, H, W = 2, 16, 16

    key = jax.random.PRNGKey(0)
    kx, kp = jax.random.split(key)
    x = jax.random.normal(kx, (N, input_nc, H, W), jnp.float32)
    params = init_params(kp, input_nc, ndf)

    out = jax.block_until_ready(jax.jit(pixel_discriminator_forward)(x, params))
    ref = reference_forward(x, params)

    assert out.shape == (N, 1, H, W), out.shape
    # bf16 MXU operands (f32 accumulation) vs. f32 reference: ~1% expected error.
    max_err = float(jnp.max(jnp.abs(out - ref)))
    assert jnp.allclose(out, ref, rtol=5e-2, atol=5e-2), max_err
    print("KERNEL_OK")
</pallas_src>

<mosaic_0001>
module attributes {stable_mosaic.version = 11 : i64} {
  func.func @stats_kernel(%arg0: i32, %arg1: i32, %arg2: memref<1x4x256xf32, #tpu.memory_space<vmem>>, %arg3: memref<64x4xbf16, #tpu.memory_space<vmem>>, %arg4: memref<64x1xf32, #tpu.memory_space<vmem>>, %arg5: memref<128x64xbf16, #tpu.memory_space<vmem>>, %arg6: memref<1x128x1xf32, #tpu.memory_space<vmem>>, %arg7: memref<1x128x1xf32, #tpu.memory_space<vmem>>) attributes {dimension_semantics = [#tpu.dimension_semantics<parallel>, #tpu.dimension_semantics<arbitrary>], iteration_bounds = array<i64: 2, 1>, scalar_prefetch = 0 : i64, scratch_operands = 0 : i64, tpu.core_type = #tpu.core_type<tc>, window_params = [{transform_indices = @transform_0, window_bounds = array<i64: 1, 4, 256>}, {pipeline_mode = #tpu.pipeline_mode<synchronous>, transform_indices = @transform_1, window_bounds = array<i64: 64, 4>}, {pipeline_mode = #tpu.pipeline_mode<synchronous>, transform_indices = @transform_2, window_bounds = array<i64: 64, 1>}, {pipeline_mode = #tpu.pipeline_mode<synchronous>, transform_indices = @transform_3, window_bounds = array<i64: 128, 64>}, {transform_indices = @transform_4, window_bounds = array<i64: 1, 128, 1>}, {transform_indices = @transform_5, window_bounds = array<i64: 1, 128, 1>}]} {
    %c0 = arith.constant 0 : index
    %c0_0 = arith.constant 0 : index
    %c0_1 = arith.constant 0 : index
    %0 = vector.load %arg2[%c0, %c0_0, %c0_1] : memref<1x4x256xf32, #tpu.memory_space<vmem>>, vector<1x4x256xf32>
    %1 = vector.shape_cast %0 : vector<1x4x256xf32> to vector<4x256xf32>
    %2 = arith.truncf %1 : vector<4x256xf32> to vector<4x256xbf16>
    %c0_2 = arith.constant 0 : index
    %c0_3 = arith.constant 0 : index
    %3 = vector.load %arg3[%c0_2, %c0_3] : memref<64x4xbf16, #tpu.memory_space<vmem>>, vector<64x4xbf16>
    %cst = arith.constant dense<0.000000e+00> : vector<64x256xf32>
    %4 = tpu.matmul %3, %2, %cst {dimension_numbers = #tpu.dot_dimension_numbers<[1], [0], [0], [1], [0, 0, 1, 1], [], []>} : vector<64x4xbf16>, vector<4x256xbf16>, vector<64x256xf32> -> vector<64x256xf32>
    %c0_4 = arith.constant 0 : index
    %c0_5 = arith.constant 0 : index
    %5 = vector.load %arg4[%c0_4, %c0_5] : memref<64x1xf32, #tpu.memory_space<vmem>>, vector<64x1xf32>
    %6 = vector.broadcast %5 : vector<64x1xf32> to vector<64x256xf32>
    %7 = arith.addf %4, %6 : vector<64x256xf32>
    %cst_6 = arith.constant 0.000000e+00 : f32
    %8 = vector.broadcast %cst_6 : f32 to vector<64x256xf32>
    %9 = arith.cmpf oge, %7, %8 : vector<64x256xf32>
    %cst_7 = arith.constant 2.000000e-01 : f32
    %10 = vector.broadcast %cst_7 : f32 to vector<64x256xf32>
    %11 = arith.mulf %10, %7 : vector<64x256xf32>
    %12 = arith.select %9, %7, %11 : vector<64x256xi1>, vector<64x256xf32>
    %c0_8 = arith.constant 0 : index
    %c0_9 = arith.constant 0 : index
    %13 = vector.load %arg5[%c0_8, %c0_9] : memref<128x64xbf16, #tpu.memory_space<vmem>>, vector<128x64xbf16>
    %14 = arith.truncf %12 : vector<64x256xf32> to vector<64x256xbf16>
    %cst_10 = arith.constant dense<0.000000e+00> : vector<128x256xf32>
    %15 = tpu.matmul %13, %14, %cst_10 {dimension_numbers = #tpu.dot_dimension_numbers<[1], [0], [0], [1], [0, 0, 1, 1], [], []>} : vector<128x64xbf16>, vector<64x256xbf16>, vector<128x256xf32> -> vector<128x256xf32>
    %cst_11 = arith.constant dense<0.000000e+00> : vector<128xf32>
    %16 = vector.multi_reduction <add>, %15, %cst_11 [1] : vector<128x256xf32> to vector<128xf32>
    %17 = vector.shape_cast %16 : vector<128xf32> to vector<128x1xf32>
    %18 = vector.shape_cast %17 : vector<128x1xf32> to vector<1x128x1xf32>
    %19 = arith.mulf %15, %15 : vector<128x256xf32>
    %cst_12 = arith.constant dense<0.000000e+00> : vector<128xf32>
    %20 = vector.multi_reduction <add>, %19, %cst_12 [1] : vector<128x256xf32> to vector<128xf32>
    %21 = vector.shape_cast %20 : vector<128xf32> to vector<128x1xf32>
    %22 = vector.shape_cast %21 : vector<128x1xf32> to vector<1x128x1xf32>
    %c0_i32 = arith.constant 0 : i32
    %23 = arith.cmpi eq, %arg1, %c0_i32 : i32
    %24 = arith.extui %23 : i1 to i32
    %c0_i32_13 = arith.constant 0 : i32
    %25 = arith.cmpi ne, %24, %c0_i32_13 : i32
    scf.if %25 {
      %cst_26 = arith.constant 0.000000e+00 : f32
      %32 = vector.broadcast %cst_26 : f32 to vector<1x128x1xf32>
      %c0_27 = arith.constant 0 : index
      %c0_28 = arith.constant 0 : index
      %c0_29 = arith.constant 0 : index
      %33 = vector.load %arg6[%c0_27, %c0_28, %c0_29] : memref<1x128x1xf32, #tpu.memory_space<vmem>>, vector<1x128x1xf32>
      tpu.vector_store %arg6[%c0_27, %c0_28, %c0_29], %32 {strides = array<i32>} : memref<1x128x1xf32, #tpu.memory_space<vmem>>, vector<1x128x1xf32>,
      %cst_30 = arith.constant 0.000000e+00 : f32
      %34 = vector.broadcast %cst_30 : f32 to vector<1x128x1xf32>
      %c0_31 = arith.constant 0 : index
      %c0_32 = arith.constant 0 : index
      %c0_33 = arith.constant 0 : index
      %35 = vector.load %arg7[%c0_31, %c0_32, %c0_33] : memref<1x128x1xf32, #tpu.memory_space<vmem>>, vector<1x128x1xf32>
      tpu.vector_store %arg7[%c0_31, %c0_32, %c0_33], %34 {strides = array<i32>} : memref<1x128x1xf32, #tpu.memory_space<vmem>>, vector<1x128x1xf32>,
    } else {
    }
    %c0_14 = arith.constant 0 : index
    %c0_15 = arith.constant 0 : index
    %c0_16 = arith.constant 0 : index
    %26 = vector.load %arg6[%c0_14, %c0_15, %c0_16] : memref<1x128x1xf32, #tpu.memory_space<vmem>>, vector<1x128x1xf32>
    %27 = arith.addf %26, %18 : vector<1x128x1xf32>
    %c0_17 = arith.constant 0 : index
    %c0_18 = arith.constant 0 : index
    %c0_19 = arith.constant 0 : index
    %28 = vector.load %arg6[%c0_17, %c0_18, %c0_19] : memref<1x128x1xf32, #tpu.memory_space<vmem>>, vector<1x128x1xf32>
    tpu.vector_store %arg6[%c0_17, %c0_18, %c0_19], %27 {strides = array<i32>} : memref<1x128x1xf32, #tpu.memory_space<vmem>>, vector<1x128x1xf32>,
    %c0_20 = arith.constant 0 : index
    %c0_21 = arith.constant 0 : index
    %c0_22 = arith.constant 0 : index
    %29 = vector.load %arg7[%c0_20, %c0_21, %c0_22] : memref<1x128x1xf32, #tpu.memory_space<vmem>>, vector<1x128x1xf32>
    %30 = arith.addf %29, %22 : vector<1x128x1xf32>
    %c0_23 = arith.constant 0 : index
    %c0_24 = arith.constant 0 : index
    %c0_25 = arith.constant 0 : index
    %31 = vector.load %arg7[%c0_23, %c0_24, %c0_25] : memref<1x128x1xf32, #tpu.memory_space<vmem>>, vector<1x128x1xf32>
    tpu.vector_store %arg7[%c0_23, %c0_24, %c0_25], %30 {strides = array<i32>} : memref<1x128x1xf32, #tpu.memory_space<vmem>>, vector<1x128x1xf32>,
    return
  }
  func.func @transform_0(%arg0: i32, %arg1: i32) -> (i32, i32, i32) {
    %c0_i32 = arith.constant 0 : i32
    %c0_i32_0 = arith.constant 0 : i32
    return %arg0, %c0_i32, %arg1 : i32, i32, i32
  }
  func.func @transform_1(%arg0: i32, %arg1: i32) -> (i32, i32) {
    %c0_i32 = arith.constant 0 : i32
    %c0_i32_0 = arith.constant 0 : i32
    %c0_i32_1 = arith.constant 0 : i32
    return %c0_i32, %c0_i32_0 : i32, i32
  }
  func.func @transform_2(%arg0: i32, %arg1: i32) -> (i32, i32) {
    %c0_i32 = arith.constant 0 : i32
    %c0_i32_0 = arith.constant 0 : i32
    %c0_i32_1 = arith.constant 0 : i32
    return %c0_i32, %c0_i32_0 : i32, i32
  }
  func.func @transform_3(%arg0: i32, %arg1: i32) -> (i32, i32) {
    %c0_i32 = arith.constant 0 : i32
    %c0_i32_0 = arith.constant 0 : i32
    %c0_i32_1 = arith.constant 0 : i32
    return %c0_i32, %c0_i32_0 : i32, i32
  }
  func.func @transform_4(%arg0: i32, %arg1: i32) -> (i32, i32, i32) {
    %c0_i32 = arith.constant 0 : i32
    %c0_i32_0 = arith.constant 0 : i32
    %c0_i32_1 = arith.constant 0 : i32
    return %arg0, %c0_i32, %c0_i32_0 : i32, i32, i32
  }
  func.func @transform_5(%arg0: i32, %arg1: i32) -> (i32, i32, i32) {
    %c0_i32 = arith.constant 0 : i32
    %c0_i32_0 = arith.constant 0 : i32
    %c0_i32_1 = arith.constant 0 : i32
    return %arg0, %c0_i32, %c0_i32_0 : i32, i32, i32
  }
}

module attributes {stable_mosaic.version = 11 : i64} {
  func.func @fwd_kernel(%arg0: i32, %arg1: i32, %arg2: memref<1x4x256xf32, #tpu.memory_space<vmem>>, %arg3: memref<64x4xbf16, #tpu.memory_space<vmem>>, %arg4: memref<64x1xf32, #tpu.memory_space<vmem>>, %arg5: memref<128x64xbf16, #tpu.memory_space<vmem>>, %arg6: memref<128x1xf32, #tpu.memory_space<vmem>>, %arg7: memref<128x1xf32, #tpu.memory_space<vmem>>, %arg8: memref<1x128xbf16, #tpu.memory_space<vmem>>, %arg9: memref<1x1x256xf32, #tpu.memory_space<vmem>>) attributes {dimension_semantics = [#tpu.dimension_semantics<parallel>, #tpu.dimension_semantics<parallel>], iteration_bounds = array<i64: 2, 1>, scalar_prefetch = 0 : i64, scratch_operands = 0 : i64, tpu.core_type = #tpu.core_type<tc>, window_params = [{transform_indices = @transform_0, window_bounds = array<i64: 1, 4, 256>}, {pipeline_mode = #tpu.pipeline_mode<synchronous>, transform_indices = @transform_1, window_bounds = array<i64: 64, 4>}, {pipeline_mode = #tpu.pipeline_mode<synchronous>, transform_indices = @transform_2, window_bounds = array<i64: 64, 1>}, {pipeline_mode = #tpu.pipeline_mode<synchronous>, transform_indices = @transform_3, window_bounds = array<i64: 128, 64>}, {pipeline_mode = #tpu.pipeline_mode<synchronous>, transform_indices = @transform_4, window_bounds = array<i64: 128, 1>}, {pipeline_mode = #tpu.pipeline_mode<synchronous>, transform_indices = @transform_5, window_bounds = array<i64: 128, 1>}, {pipeline_mode = #tpu.pipeline_mode<synchronous>, transform_indices = @transform_6, window_bounds = array<i64: 1, 128>}, {transform_indices = @transform_7, window_bounds = array<i64: 1, 1, 256>}]} {
    %c0 = arith.constant 0 : index
    %c0_0 = arith.constant 0 : index
    %c0_1 = arith.constant 0 : index
    %0 = vector.load %arg2[%c0, %c0_0, %c0_1] : memref<1x4x256xf32, #tpu.memory_space<vmem>>, vector<1x4x256xf32>
    %1 = vector.shape_cast %0 : vector<1x4x256xf32> to vector<4x256xf32>
    %2 = arith.truncf %1 : vector<4x256xf32> to vector<4x256xbf16>
    %c0_2 = arith.constant 0 : index
    %c0_3 = arith.constant 0 : index
    %3 = vector.load %arg3[%c0_2, %c0_3] : memref<64x4xbf16, #tpu.memory_space<vmem>>, vector<64x4xbf16>
    %cst = arith.constant dense<0.000000e+00> : vector<64x256xf32>
    %4 = tpu.matmul %3, %2, %cst {dimension_numbers = #tpu.dot_dimension_numbers<[1], [0], [0], [1], [0, 0, 1, 1], [], []>} : vector<64x4xbf16>, vector<4x256xbf16>, vector<64x256xf32> -> vector<64x256xf32>
    %c0_4 = arith.constant 0 : index
    %c0_5 = arith.constant 0 : index
    %5 = vector.load %arg4[%c0_4, %c0_5] : memref<64x1xf32, #tpu.memory_space<vmem>>, vector<64x1xf32>
    %6 = vector.broadcast %5 : vector<64x1xf32> to vector<64x256xf32>
    %7 = arith.addf %4, %6 : vector<64x256xf32>
    %cst_6 = arith.constant 0.000000e+00 : f32
    %8 = vector.broadcast %cst_6 : f32 to vector<64x256xf32>
    %9 = arith.cmpf oge, %7, %8 : vector<64x256xf32>
    %cst_7 = arith.constant 2.000000e-01 : f32
    %10 = vector.broadcast %cst_7 : f32 to vector<64x256xf32>
    %11 = arith.mulf %10, %7 : vector<64x256xf32>
    %12 = arith.select %9, %7, %11 : vector<64x256xi1>, vector<64x256xf32>
    %c0_8 = arith.constant 0 : index
    %c0_9 = arith.constant 0 : index
    %13 = vector.load %arg5[%c0_8, %c0_9] : memref<128x64xbf16, #tpu.memory_space<vmem>>, vector<128x64xbf16>
    %14 = arith.truncf %12 : vector<64x256xf32> to vector<64x256xbf16>
    %cst_10 = arith.constant dense<0.000000e+00> : vector<128x256xf32>
    %15 = tpu.matmul %13, %14, %cst_10 {dimension_numbers = #tpu.dot_dimension_numbers<[1], [0], [0], [1], [0, 0, 1, 1], [], []>} : vector<128x64xbf16>, vector<64x256xbf16>, vector<128x256xf32> -> vector<128x256xf32>
    %c0_11 = arith.constant 0 : index
    %c0_12 = arith.constant 0 : index
    %16 = vector.load %arg6[%c0_11, %c0_12] : memref<128x1xf32, #tpu.memory_space<vmem>>, vector<128x1xf32>
    %17 = vector.broadcast %16 : vector<128x1xf32> to vector<128x256xf32>
    %18 = arith.mulf %15, %17 : vector<128x256xf32>
    %c0_13 = arith.constant 0 : index
    %c0_14 = arith.constant 0 : index
    %19 = vector.load %arg7[%c0_13, %c0_14] : memref<128x1xf32, #tpu.memory_space<vmem>>, vector<128x1xf32>
    %20 = vector.broadcast %19 : vector<128x1xf32> to vector<128x256xf32>
    %21 = arith.addf %18, %20 : vector<128x256xf32>
    %cst_15 = arith.constant 0.000000e+00 : f32
    %22 = vector.broadcast %cst_15 : f32 to vector<128x256xf32>
    %23 = arith.cmpf oge, %21, %22 : vector<128x256xf32>
    %cst_16 = arith.constant 2.000000e-01 : f32
    %24 = vector.broadcast %cst_16 : f32 to vector<128x256xf32>
    %25 = arith.mulf %24, %21 : vector<128x256xf32>
    %26 = arith.select %23, %21, %25 : vector<128x256xi1>, vector<128x256xf32>
    %c0_17 = arith.constant 0 : index
    %c0_18 = arith.constant 0 : index
    %27 = vector.load %arg8[%c0_17, %c0_18] : memref<1x128xbf16, #tpu.memory_space<vmem>>, vector<1x128xbf16>
    %28 = arith.truncf %26 : vector<128x256xf32> to vector<128x256xbf16>
    %cst_19 = arith.constant dense<0.000000e+00> : vector<1x256xf32>
    %29 = tpu.matmul %27, %28, %cst_19 {dimension_numbers = #tpu.dot_dimension_numbers<[1], [0], [0], [1], [0, 0, 1, 1], [], []>} : vector<1x128xbf16>, vector<128x256xbf16>, vector<1x256xf32> -> vector<1x256xf32>
    %30 = vector.shape_cast %29 : vector<1x256xf32> to vector<1x1x256xf32>
    %c0_20 = arith.constant 0 : index
    %c0_21 = arith.constant 0 : index
    %c0_22 = arith.constant 0 : index
    %31 = vector.load %arg9[%c0_20, %c0_21, %c0_22] : memref<1x1x256xf32, #tpu.memory_space<vmem>>, vector<1x1x256xf32>
    tpu.vector_store %arg9[%c0_20, %c0_21, %c0_22], %30 {strides = array<i32>} : memref<1x1x256xf32, #tpu.memory_space<vmem>>, vector<1x1x256xf32>,
    return
  }
  func.func @transform_0(%arg0: i32, %arg1: i32) -> (i32, i32, i32) {
    %c0_i32 = arith.constant 0 : i32
    %c0_i32_0 = arith.constant 0 : i32
    return %arg0, %c0_i32, %arg1 : i32, i32, i32
  }
  func.func @transform_1(%arg0: i32, %arg1: i32) -> (i32, i32) {
    %c0_i32 = arith.constant 0 : i32
    %c0_i32_0 = arith.constant 0 : i32
    %c0_i32_1 = arith.constant 0 : i32
    return %c0_i32, %c0_i32_0 : i32, i32
  }
  func.func @transform_2(%arg0: i32, %arg1: i32) -> (i32, i32) {
    %c0_i32 = arith.constant 0 : i32
    %c0_i32_0 = arith.constant 0 : i32
    %c0_i32_1 = arith.constant 0 : i32
    return %c0_i32, %c0_i32_0 : i32, i32
  }
  func.func @transform_3(%arg0: i32, %arg1: i32) -> (i32, i32) {
    %c0_i32 = arith.constant 0 : i32
    %c0_i32_0 = arith.constant 0 : i32
    %c0_i32_1 = arith.constant 0 : i32
    return %c0_i32, %c0_i32_0 : i32, i32
  }
  func.func @transform_4(%arg0: i32, %arg1: i32) -> (i32, i32) {
    %c0_i32 = arith.constant 0 : i32
    %c0_i32_0 = arith.constant 0 : i32
    %c0_i32_1 = arith.constant 0 : i32
    return %c0_i32, %c0_i32_0 : i32, i32
  }
  func.func @transform_5(%arg0: i32, %arg1: i32) -> (i32, i32) {
    %c0_i32 = arith.constant 0 : i32
    %c0_i32_0 = arith.constant 0 : i32
    %c0_i32_1 = arith.constant 0 : i32
    return %c0_i32, %c0_i32_0 : i32, i32
  }
  func.func @transform_6(%arg0: i32, %arg1: i32) -> (i32, i32) {
    %c0_i32 = arith.constant 0 : i32
    %c0_i32_0 = arith.constant 0 : i32
    %c0_i32_1 = arith.constant 0 : i32
    return %c0_i32, %c0_i32_0 : i32, i32
  }
  func.func @transform_7(%arg0: i32, %arg1: i32) -> (i32, i32, i32) {
    %c0_i32 = arith.constant 0 : i32
    %c0_i32_0 = arith.constant 0 : i32
    return %arg0, %c0_i32, %arg1 : i32, i32, i32
  }
}

</mosaic_0001>

<llo_original>
// kernel: pixel_discriminator_forward.3
$region0: #{pixel_discriminator_forward.3}
  #allocation0 [shape = 'u32[]', space=smem, size = 0x4, offset = 0x4, fixed_abs, tag = 'smem constant byte address 0x4 - core index']
  #allocation1 [shape = 'u32[144,128]{1,0:T(1,128)}', space=vmem, size = 0x12000, scoped, tag = 'internal scratch']
  %s0 = inlined_call_operand.vmem [shape: f32[2,4,256], index: 0, kind: input, shape index: {}]
  %s1 = inlined_call_operand.vmem [shape: bf16[64,4], index: 1, kind: input, shape index: {}]
  %s2 = inlined_call_operand.vmem [shape: f32[64,1], index: 2, kind: input, shape index: {}]
  %s3 = inlined_call_operand.vmem [shape: bf16[128,64], index: 3, kind: input, shape index: {}]
  %s4 = inlined_call_operand.vmem [shape: f32[128,1], index: 4, kind: input, shape index: {}]
  %s5 = inlined_call_operand.vmem [shape: f32[128,1], index: 5, kind: input, shape index: {}]
  %s6 = inlined_call_operand.vmem [shape: bf16[1,128], index: 6, kind: input, shape index: {}]
  %s7 = inlined_call_operand.vmem [shape: f32[2,1,256], index: 7, kind: output, shape index: {}]
  %s8 = sld [smem:[#allocation0]]
  $region61: #{pixel_discriminator_forward.3} parent=0
    _
  %s10 = ssub.s32 1, %s8
  %s11 = scalar_select 0, %s10, %s8
  loop: start=0, step=1, limit=4
  $region2: #{pixel_discriminator_forward.3} parent=0 // loop_pre_header
    _
  $region3: #{pixel_discriminator_forward.3} parent=0 // loop_header
    %s13 = sphi 0, %s17
    %p14 = scmp.ge.s32.totalorder %s13, 4
    %s20 = sphi 0, %s32
    %s21 = sphi 0, %s28
    %s22 = sphi 0, %s20
    %s23 = sphi 0, %s21
    %s24 = sphi 0, %s22
    %s25 = sphi 0, %s23
    %s37 = sphi 0, %s39
    %s40 = sphi 0, %s37
    %s41 = sphi 0, %s40
    %s57 = sphi 0, %s41
    %s61 = sphi 0, %s61
    %s63 = sphi 0, %s61
    %s64 = sphi 0, %s63
    %s78 = sphi 0, %s64
    %s82 = sphi 0, %s82
    %s84 = sphi 0, %s82
    %s85 = sphi 0, %s84
    %s99 = sphi 0, %s85
    %s103 = sphi 0, %s103
    %s105 = sphi 0, %s103
    %s106 = sphi 0, %s105
    %s120 = sphi 0, %s106
    %s124 = sphi 0, %s124
    %s126 = sphi 0, %s124
    %s127 = sphi 0, %s126
    %s141 = sphi 0, %s127
    %s145 = sphi 0, %s145
    %s147 = sphi 0, %s145
    %s148 = sphi 0, %s147
    %s162 = sphi 0, %s148
    %s166 = sphi 0, %s166
    %s168 = sphi 0, %s166
    %s169 = sphi 0, %s168
    %s183 = sphi 0, %s169
    %s191 = sphi 0, %s193
    %s194 = sphi 0, %s191
    %s195 = sphi 0, %s194
    %s211 = sphi 0, %s195
  $region4: #{pixel_discriminator_forward.3} parent=0 // loop_header_branch
    %16 = sbr.rel (%p14) target = $region8
  $region5: #{pixel_discriminator_forward.3} parent=0 // loop_body
    %s18 = ssub.s32 %s13, 1
    %s19 = ssub.s32 %s13, 2
    %s26 = sadd.s32 1, %s21
    %p27 = scmp.ge.s32.totalorder %s26, 1
    %s28 = scalar_select %p27, 0, %s26
    %s29 = sadd.s32 1, %s20
    %s30 = scalar_select %p27, %s29, %s20
    %p31 = scmp.ge.s32.totalorder %s30, 2
    %s32 = scalar_select %p31, 0, %s30
    %s33 = ssub.s32 %s20, %s32
    %s34 = ssub.s32 %s21, %s28
    %s35 = sor.u32 %s33, %s34
    %p36 = scmp.eq.s32.totalorder %s35, 0
    %s38 = sadd.s32 %s37, 1
    %s39 = scalar_select %p36, %s37, %s38
    %p42 = pneg %p36
    %p43 = scmp.eq.s32.totalorder %s13, 1
    %p44 = por %p42, %p43
    %p45 = scmp.ne.s32.totalorder %s37, %s40
    %p46 = scmp.eq.s32.totalorder %s13, 0
    %p47 = por %p45, %p46
    %p48 = scmp.ne.s32.totalorder %s37, %s40
    %p49 = scmp.eq.s32.totalorder %s18, 1
    %p50 = por %p48, %p49
    %p51 = scmp.ne.s32.totalorder %s40, %s41
    %p52 = scmp.eq.s32.totalorder %s18, 0
    %p53 = por %p51, %p52
    %p54 = scmp.ne.s32.totalorder %s40, %s41
    %p55 = scmp.eq.s32.totalorder %s19, 1
    %p56 = por %p54, %p55
    %p58 = scmp.ne.s32.totalorder %s41, %s57
    %p59 = scmp.eq.s32.totalorder %s19, 0
    %p60 = por %p58, %p59
    %s62 = sadd.s32 %s61, 1
    %p65 = scmp.eq.s32.totalorder %s13, 1
    %p66 = scmp.ne.s32.totalorder %s61, %s63
    %p67 = scmp.eq.s32.totalorder %s13, 0
    %p68 = por %p66, %p67
    %p69 = scmp.ne.s32.totalorder %s61, %s63
    %p70 = scmp.eq.s32.totalorder %s18, 1
    %p71 = por %p69, %p70
    %p72 = scmp.ne.s32.totalorder %s63, %s64
    %p73 = scmp.eq.s32.totalorder %s18, 0
    %p74 = por %p72, %p73
    %p75 = scmp.ne.s32.totalorder %s63, %s64
    %p76 = scmp.eq.s32.totalorder %s19, 1
    %p77 = por %p75, %p76
    %p79 = scmp.ne.s32.totalorder %s64, %s78
    %p80 = scmp.eq.s32.totalorder %s19, 0
    %p81 = por %p79, %p80
    %s83 = sadd.s32 %s82, 1
    %p86 = scmp.eq.s32.totalorder %s13, 1
    %p87 = scmp.ne.s32.totalorder %s82, %s84
    %p88 = scmp.eq.s32.totalorder %s13, 0
    %p89 = por %p87, %p88
    %p90 = scmp.ne.s32.totalorder %s82, %s84
    %p91 = scmp.eq.s32.totalorder %s18, 1
    %p92 = por %p90, %p91
    %p93 = scmp.ne.s32.totalorder %s84, %s85
    %p94 = scmp.eq.s32.totalorder %s18, 0
    %p95 = por %p93, %p94
    %p96 = scmp.ne.s32.totalorder %s84, %s85
    %p97 = scmp.eq.s32.totalorder %s19, 1
    %p98 = por %p96, %p97
    %p100 = scmp.ne.s32.totalorder %s85, %s99
    %p101 = scmp.eq.s32.totalorder %s19, 0
    %p102 = por %p100, %p101
    %s104 = sadd.s32 %s103, 1
    %p107 = scmp.eq.s32.totalorder %s13, 1
    %p108 = scmp.ne.s32.totalorder %s103, %s105
    %p109 = scmp.eq.s32.totalorder %s13, 0
    %p110 = por %p108, %p109
    %p111 = scmp.ne.s32.totalorder %s103, %s105
    %p112 = scmp.eq.s32.totalorder %s18, 1
    %p113 = por %p111, %p112
    %p114 = scmp.ne.s32.totalorder %s105, %s106
    %p115 = scmp.eq.s32.totalorder %s18, 0
    %p116 = por %p114, %p115
    %p117 = scmp.ne.s32.totalorder %s105, %s106
    %p118 = scmp.eq.s32.totalorder %s19, 1
    %p119 = por %p117, %p118
    %p121 = scmp.ne.s32.totalorder %s106, %s120
    %p122 = scmp.eq.s32.totalorder %s19, 0
    %p123 = por %p121, %p122
    %s125 = sadd.s32 %s124, 1
    %p128 = scmp.eq.s32.totalorder %s13, 1
    %p129 = scmp.ne.s32.totalorder %s124, %s126
    %p130 = scmp.eq.s32.totalorder %s13, 0
    %p131 = por %p129, %p130
    %p132 = scmp.ne.s32.totalorder %s124, %s126
    %p133 = scmp.eq.s32.totalorder %s18, 1
    %p134 = por %p132, %p133
    %p135 = scmp.ne.s32.totalorder %s126, %s127
    %p136 = scmp.eq.s32.totalorder %s18, 0
    %p137 = por %p135, %p136
    %p138 = scmp.ne.s32.totalorder %s126, %s127
    %p139 = scmp.eq.s32.totalorder %s19, 1
    %p140 = por %p138, %p139
    %p142 = scmp.ne.s32.totalorder %s127, %s141
    %p143 = scmp.eq.s32.totalorder %s19, 0
    %p144 = por %p142, %p143
    %s146 = sadd.s32 %s145, 1
    %p149 = scmp.eq.s32.totalorder %s13, 1
    %p150 = scmp.ne.s32.totalorder %s145, %s147
    %p151 = scmp.eq.s32.totalorder %s13, 0
    %p152 = por %p150, %p151
    %p153 = scmp.ne.s32.totalorder %s145, %s147
    %p154 = scmp.eq.s32.totalorder %s18, 1
    %p155 = por %p153, %p154
    %p156 = scmp.ne.s32.totalorder %s147, %s148
    %p157 = scmp.eq.s32.totalorder %s18, 0
    %p158 = por %p156, %p157
    %p159 = scmp.ne.s32.totalorder %s147, %s148
    %p160 = scmp.eq.s32.totalorder %s19, 1
    %p161 = por %p159, %p160
    %p163 = scmp.ne.s32.totalorder %s148, %s162
    %p164 = scmp.eq.s32.totalorder %s19, 0
    %p165 = por %p163, %p164
    %s167 = sadd.s32 %s166, 1
    %p170 = scmp.eq.s32.totalorder %s13, 1
    %p171 = scmp.ne.s32.totalorder %s166, %s168
    %p172 = scmp.eq.s32.totalorder %s13, 0
    %p173 = por %p171, %p172
    %p174 = scmp.ne.s32.totalorder %s166, %s168
    %p175 = scmp.eq.s32.totalorder %s18, 1
    %p176 = por %p174, %p175
    %p177 = scmp.ne.s32.totalorder %s168, %s169
    %p178 = scmp.eq.s32.totalorder %s18, 0
    %p179 = por %p177, %p178
    %p180 = scmp.ne.s32.totalorder %s168, %s169
    %p181 = scmp.eq.s32.totalorder %s19, 1
    %p182 = por %p180, %p181
    %p184 = scmp.ne.s32.totalorder %s169, %s183
    %p185 = scmp.eq.s32.totalorder %s19, 0
    %p186 = por %p184, %p185
    %s187 = ssub.s32 %s20, %s32
    %s188 = ssub.s32 %s21, %s28
    %s189 = sor.u32 %s187, %s188
    %p190 = scmp.eq.s32.totalorder %s189, 0
    %s192 = sadd.s32 %s191, 1
    %s193 = scalar_select %p190, %s191, %s192
    %p196 = pneg %p190
    %p197 = scmp.eq.s32.totalorder %s13, 1
    %p198 = por %p196, %p197
    %p199 = scmp.ne.s32.totalorder %s191, %s194
    %p200 = scmp.eq.s32.totalorder %s13, 0
    %p201 = por %p199, %p200
    %p202 = scmp.ne.s32.totalorder %s191, %s194
    %p203 = scmp.eq.s32.totalorder %s18, 1
    %p204 = por %p202, %p203
    %p205 = scmp.ne.s32.totalorder %s194, %s195
    %p206 = scmp.eq.s32.totalorder %s18, 0
    %p207 = por %p205, %p206
    %p208 = scmp.ne.s32.totalorder %s194, %s195
    %p209 = scmp.eq.s32.totalorder %s19, 1
    %p210 = por %p208, %p209
    %p212 = scmp.ne.s32.totalorder %s195, %s211
    %p213 = scmp.eq.s32.totalorder %s19, 0
    %p214 = por %p212, %p213
    %p215 = scmp.le.s32.totalorder 1, %s13
    %p216 = scmp.lt.s32.totalorder %s13, 3
    %p217 = pnand %p215, %p216
    %p218 = pneg %p217
    // Predicated region
    $region9: #{pixel_discriminator_forward.3} parent=5 // pred_check
      _
    $region10: #{pixel_discriminator_forward.3} parent=5 // pred_check_branch
      %220 = sbr.rel (%p217) target = $region12
    $region11: #{pixel_discriminator_forward.3} parent=5 // pred_region
      %s221 = ssub.s32 %s13, 1
      // Predicated region
      $region13: #{pixel_discriminator_forward.3} parent=11 // pred_check
        %p222 = pneg %p74
      $region14: #{pixel_discriminator_forward.3} parent=11 // pred_check_branch
        %224 = sbr.rel (%p222) target = $region16
      $region15: #{pixel_discriminator_forward.3} parent=11 // pred_region
        _
      $region16: #{pixel_discriminator_forward.3} parent=11 // pred_fallthru
        _
      // Predicated region
      $region17: #{pixel_discriminator_forward.3} parent=11 // pred_check
        %p225 = pneg %p95
      $region18: #{pixel_discriminator_forward.3} parent=11 // pred_check_branch
        %227 = sbr.rel (%p225) target = $region20
      $region19: #{pixel_discriminator_forward.3} parent=11 // pred_region
        _
      $region20: #{pixel_discriminator_forward.3} parent=11 // pred_fallthru
        _
      // Predicated region
      $region21: #{pixel_discriminator_forward.3} parent=11 // pred_check
        %p228 = pneg %p116
      $region22: #{pixel_discriminator_forward.3} parent=11 // pred_check_branch
        %230 = sbr.rel (%p228) target = $region24
      $region23: #{pixel_discriminator_forward.3} parent=11 // pred_region
        _
      $region24: #{pixel_discriminator_forward.3} parent=11 // pred_fallthru
        _
      // Predicated region
      $region25: #{pixel_discriminator_forward.3} parent=11 // pred_check
        %p231 = pneg %p137
      $region26: #{pixel_discriminator_forward.3} parent=11 // pred_check_branch
        %233 = sbr.rel (%p231) target = $region28
      $region27: #{pixel_discriminator_forward.3} parent=11 // pred_region
        _
      $region28: #{pixel_discriminator_forward.3} parent=11 // pred_fallthru
        _
      // Predicated region
      $region29: #{pixel_discriminator_forward.3} parent=11 // pred_check
        %p234 = pneg %p158
      $region30: #{pixel_discriminator_forward.3} parent=11 // pred_check_branch
        %236 = sbr.rel (%p234) target = $region32
      $region31: #{pixel_discriminator_forward.3} parent=11 // pred_region
        _
      $region32: #{pixel_discriminator_forward.3} parent=11 // pred_fallthru
        _
      // Predicated region
      $region33: #{pixel_discriminator_forward.3} parent=11 // pred_check
        %p237 = pneg %p179
      $region34: #{pixel_discriminator_forward.3} parent=11 // pred_check_branch
        %239 = sbr.rel (%p237) target = $region36
      $region35: #{pixel_discriminator_forward.3} parent=11 // pred_region
        _
      $region36: #{pixel_discriminator_forward.3} parent=11 // pred_fallthru
        _
    $region12: #{pixel_discriminator_forward.3} parent=5 // pred_fallthru
      _
    %p240 = scmp.lt.s32.totalorder %s13, 2
    // Predicated region
    $region37: #{pixel_discriminator_forward.3} parent=5 // pred_check
      %p241 = pneg %p240
    $region38: #{pixel_discriminator_forward.3} parent=5 // pred_check_branch
      %243 = sbr.rel (%p241) target = $region40
    $region39: #{pixel_discriminator_forward.3} parent=5 // pred_region
      // Predicated region
      $region41: #{pixel_discriminator_forward.3} parent=39 // pred_check
        %p244 = pneg %p47
      $region42: #{pixel_discriminator_forward.3} parent=39 // pred_check_branch
        %246 = sbr.rel (%p244) target = $region44
      $region43: #{pixel_discriminator_forward.3} parent=39 // pred_region
        %s247 = smul.u32 2, %s21
        %p248 = scmp.lt.s32.totalorder %s20, 1
        %s249 = scalar_select %p248, %s20, 1
        %p250 = scmp.lt.s32.totalorder %s247, 1
        %s251 = scalar_select %p250, %s247, 1
        %s252 = smul.addr %s249, 2
        %s253 = sadd.s32 %s251, %s252
        %s254 = smul.addr %s253, 4
        %s255 = scalar_lea.vmem %s0, %s254
        %s256 = smul.u32 2, %s21
      $region44: #{pixel_discriminator_forward.3} parent=39 // pred_fallthru
        _
    $region40: #{pixel_discriminator_forward.3} parent=5 // pred_fallthru
      _
    %p257 = scmp.le.s32.totalorder 1, %s13
    %p258 = scmp.lt.s32.totalorder %s13, 3
    %p259 = pnand %p257, %p258
    %p260 = pneg %p259
    // Predicated region
    $region45: #{pixel_discriminator_forward.3} parent=5 // pred_check
      _
    $region46: #{pixel_discriminator_forward.3} parent=5 // pred_check_branch
      %262 = sbr.rel (%p259) target = $region48
    $region47: #{pixel_discriminator_forward.3} parent=5 // pred_region
      %s263 = ssub.s32 %s13, 1
      %s264 = smul.u32 2, %s23
      %p265 = scmp.lt.s32.totalorder %s22, 1
      %s266 = scalar_select %p265, %s22, 1
      %p267 = scmp.lt.s32.totalorder %s264, 1
      %s268 = scalar_select %p267, %s264, 1
      %s269 = smul.addr %s266, 2
      %s270 = sadd.s32 %s268, %s269
      %s271 = smul.addr %s270, 4
      %s272 = scalar_lea.vmem %s0, %s271
      %p273 = pneg %p53
      %p274 = pneg %p50
      %p275 = pneg %p74
      %p276 = pneg %p71
      %p277 = pneg %p95
      %p278 = pneg %p92
      %p279 = pneg %p116
      %p280 = pneg %p113
      %p281 = pneg %p137
      %p282 = pneg %p134
      %p283 = pneg %p158
      %p284 = pneg %p155
      %p285 = pneg %p179
      %p286 = pneg %p176
      %p287 = pneg %p207
      %p288 = pneg %p204
      %s289 = smul.u32 2, %s23
      %p290 = scmp.lt.s32.totalorder %s22, 1
      %s291 = scalar_select %p290, %s22, 1
      %p292 = scmp.lt.s32.totalorder %s289, 1
      %s293 = scalar_select %p292, %s289, 1
      %s294 = smul.addr %s291, 2
      %s295 = sadd.s32 %s293, %s294
      %s296 = scalar_lea.vmem %s7, %s295
      %s297 = smul.u32 2, %s23
      %p298 = scmp.lt.s32.totalorder %s22, 1
      %s299 = scalar_select %p298, %s22, 1
      %p300 = scmp.lt.s32.totalorder %s297, 1
      %s301 = scalar_select %p300, %s297, 1
      %s302 = smul.addr %s299, 2
      %s303 = sadd.s32 %s301, %s302
      %s304 = smul.addr %s303, 4
      %s305 = scalar_lea.vmem %s0, %s304
      %s306 = smul.u32 2, %s23
      %s307 = smul.u32 2, %s23
      %p308 = scmp.lt.s32.totalorder %s22, 1
      %s309 = scalar_select %p308, %s22, 1
      %p310 = scmp.lt.s32.totalorder %s307, 1
      %s311 = scalar_select %p310, %s307, 1
      %s312 = smul.addr %s309, 2
      %s313 = sadd.s32 %s311, %s312
      %s314 = scalar_lea.vmem %s7, %s313
      %s315 = smul.u32 2, %s23
      %v317 = vld [vmem:[%s305] sm:$0xff]
      %v319 = vcombine.high %v317, %v317
      %v321 = vpack.c.bf16 %v317, %v317
      %v322 = vpack.c.bf16 %v319, %v319
      %v323 = vld [vmem:[%s1] sm:$0xf]
      %v324 = vld [vmem:[%s1 + $0x4] sm:$0xf]
      %v325 = vld [vmem:[%s1 + $0x8] sm:$0xf]
      %v326 = vld [vmem:[%s1 + $0xc] sm:$0xf]
      %v327 = vld [vmem:[%s1 + $0x10] sm:$0xf]
      %v328 = vld [vmem:[%s1 + $0x14] sm:$0xf]
      %v329 = vld [vmem:[%s1 + $0x18] sm:$0xf]
      %v330 = vld [vmem:[%s1 + $0x1c] sm:$0xf]
      %v331 = vld [vmem:[%s2] sm:$0xff]
      %v332 = vld [vmem:[%s2 + $0x8] sm:$0xff]
      %v333 = vld [vmem:[%s2 + $0x10] sm:$0xff]
      %v334 = vld [vmem:[%s2 + $0x18] sm:$0xff]
      %v335 = vld [vmem:[%s2 + $0x20] sm:$0xff]
      %v336 = vld [vmem:[%s2 + $0x28] sm:$0xff]
      %v337 = vld [vmem:[%s2 + $0x30] sm:$0xff]
      %v338 = vld [vmem:[%s2 + $0x38] sm:$0xff]
      %340 = vset.pattern.permute.xlu0 0
      %341 = vperm.xlu0 %340, %v331
      %v342 = vpop.permute.xlu0 %341
      %345 = vset.pattern.permute.xlu0 0
      %346 = vperm.xlu0 %345, %v332
      %v347 = vpop.permute.xlu0 %346
      %350 = vset.pattern.permute.xlu0 0
      %351 = vperm.xlu0 %350, %v333
      %v352 = vpop.permute.xlu0 %351
      %355 = vset.pattern.permute.xlu0 0
      %356 = vperm.xlu0 %355, %v334
      %v357 = vpop.permute.xlu0 %356
      %360 = vset.pattern.permute.xlu0 0
      %361 = vperm.xlu0 %360, %v335
      %v362 = vpop.permute.xlu0 %361
      %365 = vset.pattern.permute.xlu0 0
      %366 = vperm.xlu0 %365, %v336
      %v367 = vpop.permute.xlu0 %366
      %370 = vset.pattern.permute.xlu0 0
      %371 = vperm.xlu0 %370, %v337
      %v372 = vpop.permute.xlu0 %371
      %375 = vset.pattern.permute.xlu0 0
      %376 = vperm.xlu0 %375, %v338
      %v377 = vpop.permute.xlu0 %376
      %v387 = vunpack.c.l.b16 %v323
      %v388 = vunpack.c.l.b16 %v324
      %v389 = vunpack.c.l.b16 %v325
      %v390 = vunpack.c.l.b16 %v326
      %v391 = vunpack.c.l.b16 %v327
      %v392 = vunpack.c.l.b16 %v328
      %v393 = vunpack.c.l.b16 %v329
      %v394 = vunpack.c.l.b16 %v330
      %v395 = vpack.c.b16 %v388, %v387
      %v396 = vpack.c.b16 %v390, %v389
      %v397 = vpack.c.b16 %v392, %v391
      %v398 = vpack.c.b16 %v394, %v393
      %vm399 = vcmask 31744
      %v401 = vsel %vm399, %v395, 0
      %v404 = vsel %vm399, %v396, 0
      %v407 = vsel %vm399, %v397, 0
      %v410 = vsel %vm399, %v398, 0
      %vm412 = vcmask 1041408
      %v414 = vsel %vm412, %v321, 0
      %v417 = vsel %vm412, %v322, 0
      %419 = vmatprep.subr.bf16.mxu0 %v417
      %420 = vmatpush1.bf16.msra.mxu0 %v414
      %421 = vmatprep.subr.bf16.mxu0 0
      %422 = vmatpush1.bf16.msra.mxu0 0
      %423 = vmatprep.subr.bf16.mxu0 0
      %424 = vmatpush1.bf16.msra.mxu0 0
      %425 = vmatprep.subr.bf16.mxu0 0
      %426 = vmatpush1.bf16.msra.mxu0 0
      %427 = vmatprep.subr.bf16.mxu0 0
      %428 = vmatpush1.bf16.msra.mxu0 0
      %429 = vmatprep.subr.bf16.mxu0 0
      %430 = vmatpush1.bf16.msra.mxu0 0
      %431 = vmatprep.subr.bf16.mxu0 0
      %432 = vmatpush1.bf16.msra.mxu0 0
      %433 = vmatprep.subr.bf16.mxu0 0
      %434 = vmatpush1.bf16.msra.mxu0 0
      %435 = vmatprep.subr.bf16.mxu0 0
      %436 = vmatpush1.bf16.msra.mxu0 0
      %437 = vmatprep.subr.bf16.mxu0 0
      %438 = vmatpush1.bf16.msra.mxu0 0
      %439 = vmatprep.subr.bf16.mxu0 0
      %440 = vmatpush1.bf16.msra.mxu0 0
      %441 = vmatprep.subr.bf16.mxu0 0
      %442 = vmatpush1.bf16.msra.mxu0 0
      %443 = vmatprep.subr.bf16.mxu0 0
      %444 = vmatpush1.bf16.msra.mxu0 0
      %445 = vmatprep.subr.bf16.mxu0 0
      %446 = vmatpush1.bf16.msra.mxu0 0
      %447 = vmatprep.subr.bf16.mxu0 0
      %448 = vmatpush1.bf16.msra.mxu0 0
      %449 = vmatprep.subr.bf16.mxu0 0
      %450 = vmatpush1.bf16.msra.mxu0 0
      %451 = vmatprep.mubr.bf16.mxu0 0
      %452 = vmatmul.mubr.bf16.gmra.mrb[0].mxu0 %v401
      %v453 = vpop.f32.mrb[0].mxu0
      %v454 = vadd.f32 %v342, %v453
      %v455 = vpop.f32.mrb[0].mxu0
      %v456 = vadd.f32 %v342, %v455
      %v457 = vpop.f32.mrb[0].mxu0
      %v458 = vadd.f32 %v347, %v457
      %v459 = vpop.f32.mrb[0].mxu0
      %v460 = vadd.f32 %v347, %v459
      %461 = vmatprep.mubr.bf16.mxu0 0
      %462 = vmatmul.mubr.bf16.gmra.mrb[0].mxu0 %v404
      %v463 = vpop.f32.mrb[0].mxu0
      %v464 = vadd.f32 %v352, %v463
      %v465 = vpop.f32.mrb[0].mxu0
      %v466 = vadd.f32 %v352, %v465
      %v467 = vpop.f32.mrb[0].mxu0
      %v468 = vadd.f32 %v357, %v467
      %v469 = vpop.f32.mrb[0].mxu0
      %v470 = vadd.f32 %v357, %v469
      %471 = vmatprep.mubr.bf16.mxu0 0
      %472 = vmatmul.mubr.bf16.gmra.mrb[0].mxu0 %v407
      %v473 = vpop.f32.mrb[0].mxu0
      %v474 = vadd.f32 %v362, %v473
      %v475 = vpop.f32.mrb[0].mxu0
      %v476 = vadd.f32 %v362, %v475
      %v477 = vpop.f32.mrb[0].mxu0
      %v478 = vadd.f32 %v367, %v477
      %v479 = vpop.f32.mrb[0].mxu0
      %v480 = vadd.f32 %v367, %v479
      %481 = vmatprep.mubr.bf16.mxu0 0
      %482 = vmatmul.mubr.bf16.gmra.mrb[0].mxu0 %v410
      %v483 = vpop.f32.mrb[0].mxu0
      %v484 = vadd.f32 %v372, %v483
      %v485 = vpop.f32.mrb[0].mxu0
      %v486 = vadd.f32 %v372, %v485
      %v487 = vpop.f32.mrb[0].mxu0
      %v488 = vadd.f32 %v377, %v487
      %v489 = vpop.f32.mrb[0].mxu0
      %v490 = vadd.f32 %v377, %v489
      %491 = vdwg.mxu0
      %vm492 = vcmp.ge.f32.partialorder %v454, 0.0
      %vm493 = vcmp.ge.f32.partialorder %v456, 0.0
      %vm494 = vcmp.ge.f32.partialorder %v458, 0.0
      %vm495 = vcmp.ge.f32.partialorder %v460, 0.0
      %vm496 = vcmp.ge.f32.partialorder %v464, 0.0
      %vm497 = vcmp.ge.f32.partialorder %v466, 0.0
      %vm498 = vcmp.ge.f32.partialorder %v468, 0.0
      %vm499 = vcmp.ge.f32.partialorder %v470, 0.0
      %vm500 = vcmp.ge.f32.partialorder %v474, 0.0
      %vm501 = vcmp.ge.f32.partialorder %v476, 0.0
      %vm502 = vcmp.ge.f32.partialorder %v478, 0.0
      %vm503 = vcmp.ge.f32.partialorder %v480, 0.0
      %vm504 = vcmp.ge.f32.partialorder %v484, 0.0
      %vm505 = vcmp.ge.f32.partialorder %v486, 0.0
      %vm506 = vcmp.ge.f32.partialorder %v488, 0.0
      %vm507 = vcmp.ge.f32.partialorder %v490, 0.0
      %v508 = vmul.f32 %v454, 0.2
      %v509 = vmul.f32 %v456, 0.2
      %v510 = vmul.f32 %v458, 0.2
      %v511 = vmul.f32 %v460, 0.2
      %v512 = vmul.f32 %v464, 0.2
      %v513 = vmul.f32 %v466, 0.2
      %v514 = vmul.f32 %v468, 0.2
      %v515 = vmul.f32 %v470, 0.2
      %v516 = vmul.f32 %v474, 0.2
      %v517 = vmul.f32 %v476, 0.2
      %v518 = vmul.f32 %v478, 0.2
      %v519 = vmul.f32 %v480, 0.2
      %v520 = vmul.f32 %v484, 0.2
      %v521 = vmul.f32 %v486, 0.2
      %v522 = vmul.f32 %v488, 0.2
      %v523 = vmul.f32 %v490, 0.2
      %v524 = vsel %vm492, %v454, %v508
      %v525 = vsel %vm493, %v456, %v509
      %v526 = vsel %vm494, %v458, %v510
      %v527 = vsel %vm495, %v460, %v511
      %v528 = vsel %vm496, %v464, %v512
      %v529 = vsel %vm497, %v466, %v513
      %v530 = vsel %vm498, %v468, %v514
      %v531 = vsel %vm499, %v470, %v515
      %v532 = vsel %vm500, %v474, %v516
      %v533 = vsel %vm501, %v476, %v517
      %v534 = vsel %vm502, %v478, %v518
      %v535 = vsel %vm503, %v480, %v519
      %v536 = vsel %vm504, %v484, %v520
      %v537 = vsel %vm505, %v486, %v521
      %v538 = vsel %vm506, %v488, %v522
      %v539 = vsel %vm507, %v490, %v523
      %v540 = vld [vmem:[%s3] sm:$0xf]
      %v541 = vld [vmem:[%s3 + $0x4] sm:$0xf]
      %v542 = vld [vmem:[%s3 + $0x8] sm:$0xf]
      %v543 = vld [vmem:[%s3 + $0xc] sm:$0xf]
      %v544 = vld [vmem:[%s3 + $0x10] sm:$0xf]
      %v545 = vld [vmem:[%s3 + $0x14] sm:$0xf]
      %v546 = vld [vmem:[%s3 + $0x18] sm:$0xf]
      %v547 = vld [vmem:[%s3 + $0x1c] sm:$0xf]
      %v548 = vld [vmem:[%s3 + $0x20] sm:$0xf]
      %v549 = vld [vmem:[%s3 + $0x24] sm:$0xf]
      %v550 = vld [vmem:[%s3 + $0x28] sm:$0xf]
      %v551 = vld [vmem:[%s3 + $0x2c] sm:$0xf]
      %v552 = vld [vmem:[%s3 + $0x30] sm:$0xf]
      %v553 = vld [vmem:[%s3 + $0x34] sm:$0xf]
      %v554 = vld [vmem:[%s3 + $0x38] sm:$0xf]
      %v555 = vld [vmem:[%s3 + $0x3c] sm:$0xf]
      %v556 = vpack.c.bf16 %v526, %v524
      %v557 = vpack.c.bf16 %v527, %v525
      %v558 = vpack.c.bf16 %v530, %v528
      %v559 = vpack.c.bf16 %v531, %v529
      %v560 = vpack.c.bf16 %v534, %v532
      %v561 = vpack.c.bf16 %v535, %v533
      %v562 = vpack.c.bf16 %v538, %v536
      %v563 = vpack.c.bf16 %v539, %v537
      %v580 = vunpack.c.l.b16 %v540
      %v581 = vunpack.c.l.b16 %v541
      %v582 = vunpack.c.l.b16 %v542
      %v583 = vunpack.c.l.b16 %v543
      %v584 = vunpack.c.l.b16 %v544
      %v585 = vunpack.c.l.b16 %v545
      %v586 = vunpack.c.l.b16 %v546
      %v587 = vunpack.c.l.b16 %v547
      %v588 = vunpack.c.l.b16 %v548
      %v589 = vunpack.c.l.b16 %v549
      %v590 = vunpack.c.l.b16 %v550
      %v591 = vunpack.c.l.b16 %v551
      %v592 = vunpack.c.l.b16 %v552
      %v593 = vunpack.c.l.b16 %v553
      %v594 = vunpack.c.l.b16 %v554
      %v595 = vunpack.c.l.b16 %v555
      %v596 = vpack.c.b16 %v581, %v580
      %v597 = vpack.c.b16 %v583, %v582
      %v598 = vpack.c.b16 %v585, %v584
      %v599 = vpack.c.b16 %v587, %v586
      %v600 = vpack.c.b16 %v589, %v588
      %v601 = vpack.c.b16 %v591, %v590
      %v602 = vpack.c.b16 %v593, %v592
      %v603 = vpack.c.b16 %v595, %v594
      %vm604 = vcmask 523264
      %v606 = vsel %vm604, %v596, 0
      %v609 = vsel %vm604, %v597, 0
      %v612 = vsel %vm604, %v598, 0
      %v615 = vsel %vm604, %v599, 0
      %v618 = vsel %vm604, %v600, 0
      %v621 = vsel %vm604, %v601, 0
      %v624 = vsel %vm604, %v602, 0
      %v627 = vsel %vm604, %v603, 0
      %629 = vmatprep.subr.bf16.mxu0 %v557
      %630 = vmatpush1.bf16.msra.mxu0 %v556
      %631 = vmatprep.subr.bf16.mxu0 %v559
      %632 = vmatpush1.bf16.msra.mxu0 %v558
      %633 = vmatprep.subr.bf16.mxu0 %v561
      %634 = vmatpush1.bf16.msra.mxu0 %v560
      %635 = vmatprep.subr.bf16.mxu0 %v563
      %636 = vmatpush1.bf16.msra.mxu0 %v562
      %637 = vmatprep.subr.bf16.mxu0 0
      %638 = vmatpush1.bf16.msra.mxu0 0
      %639 = vmatprep.subr.bf16.mxu0 0
      %640 = vmatpush1.bf16.msra.mxu0 0
      %641 = vmatprep.subr.bf16.mxu0 0
      %642 = vmatpush1.bf16.msra.mxu0 0
      %643 = vmatprep.subr.bf16.mxu0 0
      %644 = vmatpush1.bf16.msra.mxu0 0
      %645 = vmatprep.subr.bf16.mxu0 0
      %646 = vmatpush1.bf16.msra.mxu0 0
      %647 = vmatprep.subr.bf16.mxu0 0
      %648 = vmatpush1.bf16.msra.mxu0 0
      %649 = vmatprep.subr.bf16.mxu0 0
      %650 = vmatpush1.bf16.msra.mxu0 0
      %651 = vmatprep.subr.bf16.mxu0 0
      %652 = vmatpush1.bf16.msra.mxu0 0
      %653 = vmatprep.subr.bf16.mxu0 0
      %654 = vmatpush1.bf16.msra.mxu0 0
      %655 = vmatprep.subr.bf16.mxu0 0
      %656 = vmatpush1.bf16.msra.mxu0 0
      %657 = vmatprep.subr.bf16.mxu0 0
      %658 = vmatpush1.bf16.msra.mxu0 0
      %659 = vmatprep.subr.bf16.mxu0 0
      %660 = vmatpush1.bf16.msra.mxu0 0
      %661 = vmatprep.mubr.bf16.mxu0 0
      %662 = vmatmul.mubr.bf16.gmra.mrb[0].mxu0 %v606
      %v663 = vpop.f32.mrb[0].mxu0
      %v664 = vadd.f32 0.0, %v663
      %v665 = vpop.f32.mrb[0].mxu0
      %v666 = vadd.f32 0.0, %v665
      %v667 = vpop.f32.mrb[0].mxu0
      %v668 = vadd.f32 0.0, %v667
      %v669 = vpop.f32.mrb[0].mxu0
      %v670 = vadd.f32 0.0, %v669
      %671 = vmatprep.mubr.bf16.mxu0 0
      %672 = vmatmul.mubr.bf16.gmra.mrb[0].mxu0 %v609
      %v673 = vpop.f32.mrb[0].mxu0
      %v674 = vadd.f32 0.0, %v673
      %v675 = vpop.f32.mrb[0].mxu0
      %v676 = vadd.f32 0.0, %v675
      %v677 = vpop.f32.mrb[0].mxu0
      %v678 = vadd.f32 0.0, %v677
      %v679 = vpop.f32.mrb[0].mxu0
      %v680 = vadd.f32 0.0, %v679
      %681 = vmatprep.mubr.bf16.mxu0 0
      %682 = vmatmul.mubr.bf16.gmra.mrb[0].mxu0 %v612
      %v683 = vpop.f32.mrb[0].mxu0
      %v684 = vadd.f32 0.0, %v683
      %v685 = vpop.f32.mrb[0].mxu0
      %v686 = vadd.f32 0.0, %v685
      %v687 = vpop.f32.mrb[0].mxu0
      %v688 = vadd.f32 0.0, %v687
      %v689 = vpop.f32.mrb[0].mxu0
      %v690 = vadd.f32 0.0, %v689
      %691 = vmatprep.mubr.bf16.mxu0 0
      %692 = vmatmul.mubr.bf16.gmra.mrb[0].mxu0 %v615
      %v693 = vpop.f32.mrb[0].mxu0
      %v694 = vadd.f32 0.0, %v693
      %v695 = vpop.f32.mrb[0].mxu0
      %v696 = vadd.f32 0.0, %v695
      %v697 = vpop.f32.mrb[0].mxu0
      %v698 = vadd.f32 0.0, %v697
      %v699 = vpop.f32.mrb[0].mxu0
      %v700 = vadd.f32 0.0, %v699
      %701 = vmatprep.mubr.bf16.mxu0 0
      %702 = vmatmul.mubr.bf16.gmra.mrb[0].mxu0 %v618
      %v703 = vpop.f32.mrb[0].mxu0
      %v704 = vadd.f32 0.0, %v703
      %v705 = vpop.f32.mrb[0].mxu0
      %v706 = vadd.f32 0.0, %v705
      %v707 = vpop.f32.mrb[0].mxu0
      %v708 = vadd.f32 0.0, %v707
      %v709 = vpop.f32.mrb[0].mxu0
      %v710 = vadd.f32 0.0, %v709
      %711 = vmatprep.mubr.bf16.mxu0 0
      %712 = vmatmul.mubr.bf16.gmra.mrb[0].mxu0 %v621
      %v713 = vpop.f32.mrb[0].mxu0
      %v714 = vadd.f32 0.0, %v713
      %v715 = vpop.f32.mrb[0].mxu0
      %v716 = vadd.f32 0.0, %v715
      %v717 = vpop.f32.mrb[0].mxu0
      %v718 = vadd.f32 0.0, %v717
      %v719 = vpop.f32.mrb[0].mxu0
      %v720 = vadd.f32 0.0, %v719
      %721 = vmatprep.mubr.bf16.mxu0 0
      %722 = vmatmul.mubr.bf16.gmra.mrb[0].mxu0 %v624
      %v723 = vpop.f32.mrb[0].mxu0
      %v724 = vadd.f32 0.0, %v723
      %v725 = vpop.f32.mrb[0].mxu0
      %v726 = vadd.f32 0.0, %v725
      %v727 = vpop.f32.mrb[0].mxu0
      %v728 = vadd.f32 0.0, %v727
      %v729 = vpop.f32.mrb[0].mxu0
      %v730 = vadd.f32 0.0, %v729
      %731 = vmatprep.mubr.bf16.mxu0 0
      %732 = vmatmul.mubr.bf16.gmra.mrb[0].mxu0 %v627
      %v733 = vpop.f32.mrb[0].mxu0
      %v734 = vadd.f32 0.0, %v733
      %v735 = vpop.f32.mrb[0].mxu0
      %v736 = vadd.f32 0.0, %v735
      %v737 = vpop.f32.mrb[0].mxu0
      %v738 = vadd.f32 0.0, %v737
      %v739 = vpop.f32.mrb[0].mxu0
      %v740 = vadd.f32 0.0, %v739
      %741 = vdwg.mxu0
      %v742 = vld [vmem:[%s4] sm:$0xff]
      %v743 = vld [vmem:[%s4 + $0x8] sm:$0xff]
      %v744 = vld [vmem:[%s4 + $0x10] sm:$0xff]
      %v745 = vld [vmem:[%s4 + $0x18] sm:$0xff]
      %v746 = vld [vmem:[%s4 + $0x20] sm:$0xff]
      %v747 = vld [vmem:[%s4 + $0x28] sm:$0xff]
      %v748 = vld [vmem:[%s4 + $0x30] sm:$0xff]
      %v749 = vld [vmem:[%s4 + $0x38] sm:$0xff]
      %v750 = vld [vmem:[%s4 + $0x40] sm:$0xff]
      %v751 = vld [vmem:[%s4 + $0x48] sm:$0xff]
      %v752 = vld [vmem:[%s4 + $0x50] sm:$0xff]
      %v753 = vld [vmem:[%s4 + $0x58] sm:$0xff]
      %v754 = vld [vmem:[%s4 + $0x60] sm:$0xff]
      %v755 = vld [vmem:[%s4 + $0x68] sm:$0xff]
      %v756 = vld [vmem:[%s4 + $0x70] sm:$0xff]
      %v757 = vld [vmem:[%s4 + $0x78] sm:$0xff]
      %759 = vset.pattern.permute.xlu0 0
      %760 = vperm.xlu0 %759, %v742
      %v761 = vpop.permute.xlu0 %760
      %764 = vset.pattern.permute.xlu0 0
      %765 = vperm.xlu0 %764, %v743
      %v766 = vpop.permute.xlu0 %765
      %769 = vset.pattern.permute.xlu0 0
      %770 = vperm.xlu0 %769, %v744
      %v771 = vpop.permute.xlu0 %770
      %774 = vset.pattern.permute.xlu0 0
      %775 = vperm.xlu0 %774, %v745
      %v776 = vpop.permute.xlu0 %775
      %779 = vset.pattern.permute.xlu0 0
      %780 = vperm.xlu0 %779, %v746
      %v781 = vpop.permute.xlu0 %780
      %784 = vset.pattern.permute.xlu0 0
      %785 = vperm.xlu0 %784, %v747
      %v786 = vpop.permute.xlu0 %785
      %789 = vset.pattern.permute.xlu0 0
      %790 = vperm.xlu0 %789, %v748
      %v791 = vpop.permute.xlu0 %790
      %794 = vset.pattern.permute.xlu0 0
      %795 = vperm.xlu0 %794, %v749
      %v796 = vpop.permute.xlu0 %795
      %799 = vset.pattern.permute.xlu0 0
      %800 = vperm.xlu0 %799, %v750
      %v801 = vpop.permute.xlu0 %800
      %804 = vset.pattern.permute.xlu0 0
      %805 = vperm.xlu0 %804, %v751
      %v806 = vpop.permute.xlu0 %805
      %809 = vset.pattern.permute.xlu0 0
      %810 = vperm.xlu0 %809, %v752
      %v811 = vpop.permute.xlu0 %810
      %814 = vset.pattern.permute.xlu0 0
      %815 = vperm.xlu0 %814, %v753
      %v816 = vpop.permute.xlu0 %815
      %819 = vset.pattern.permute.xlu0 0
      %820 = vperm.xlu0 %819, %v754
      %v821 = vpop.permute.xlu0 %820
      %824 = vset.pattern.permute.xlu0 0
      %825 = vperm.xlu0 %824, %v755
      %v826 = vpop.permute.xlu0 %825
      %829 = vset.pattern.permute.xlu0 0
      %830 = vperm.xlu0 %829, %v756
      %v831 = vpop.permute.xlu0 %830
      %834 = vset.pattern.permute.xlu0 0
      %835 = vperm.xlu0 %834, %v757
      %v836 = vpop.permute.xlu0 %835
      %v838 = vmul.f32 %v664, %v761
      %v839 = vmul.f32 %v666, %v761
      %v840 = vmul.f32 %v668, %v766
      %v841 = vmul.f32 %v670, %v766
      %v842 = vmul.f32 %v674, %v771
      %v843 = vmul.f32 %v676, %v771
      %v844 = vmul.f32 %v678, %v776
      %v845 = vmul.f32 %v680, %v776
      %v846 = vmul.f32 %v684, %v781
      %v847 = vmul.f32 %v686, %v781
      %v848 = vmul.f32 %v688, %v786
      %v849 = vmul.f32 %v690, %v786
      %v850 = vmul.f32 %v694, %v791
      %v851 = vmul.f32 %v696, %v791
      %v852 = vmul.f32 %v698, %v796
      %v853 = vmul.f32 %v700, %v796
      %v854 = vmul.f32 %v704, %v801
      %v855 = vmul.f32 %v706, %v801
      %v856 = vmul.f32 %v708, %v806
      %v857 = vmul.f32 %v710, %v806
      %v858 = vmul.f32 %v714, %v811
      %v859 = vmul.f32 %v716, %v811
      %v860 = vmul.f32 %v718, %v816
      %v861 = vmul.f32 %v720, %v816
      %v862 = vmul.f32 %v724, %v821
      %v863 = vmul.f32 %v726, %v821
      %v864 = vmul.f32 %v728, %v826
      %v865 = vmul.f32 %v730, %v826
      %v866 = vmul.f32 %v734, %v831
      %v867 = vmul.f32 %v736, %v831
      %v868 = vmul.f32 %v738, %v836
      %v869 = vmul.f32 %v740, %v836
      %v870 = vld [vmem:[%s5] sm:$0xff]
      %v871 = vld [vmem:[%s5 + $0x8] sm:$0xff]
      %v872 = vld [vmem:[%s5 + $0x10] sm:$0xff]
      %v873 = vld [vmem:[%s5 + $0x18] sm:$0xff]
      %v874 = vld [vmem:[%s5 + $0x20] sm:$0xff]
      %v875 = vld [vmem:[%s5 + $0x28] sm:$0xff]
      %v876 = vld [vmem:[%s5 + $0x30] sm:$0xff]
      %v877 = vld [vmem:[%s5 + $0x38] sm:$0xff]
      %v878 = vld [vmem:[%s5 + $0x40] sm:$0xff]
      %v879 = vld [vmem:[%s5 + $0x48] sm:$0xff]
      %v880 = vld [vmem:[%s5 + $0x50] sm:$0xff]
      %v881 = vld [vmem:[%s5 + $0x58] sm:$0xff]
      %v882 = vld [vmem:[%s5 + $0x60] sm:$0xff]
      %v883 = vld [vmem:[%s5 + $0x68] sm:$0xff]
      %v884 = vld [vmem:[%s5 + $0x70] sm:$0xff]
      %v885 = vld [vmem:[%s5 + $0x78] sm:$0xff]
      %887 = vset.pattern.permute.xlu0 0
      %888 = vperm.xlu0 %887, %v870
      %v889 = vpop.permute.xlu0 %888
      %892 = vset.pattern.permute.xlu0 0
      %893 = vperm.xlu0 %892, %v871
      %v894 = vpop.permute.xlu0 %893
      %897 = vset.pattern.permute.xlu0 0
      %898 = vperm.xlu0 %897, %v872
      %v899 = vpop.permute.xlu0 %898
      %902 = vset.pattern.permute.xlu0 0
      %903 = vperm.xlu0 %902, %v873
      %v904 = vpop.permute.xlu0 %903
      %907 = vset.pattern.permute.xlu0 0
      %908 = vperm.xlu0 %907, %v874
      %v909 = vpop.permute.xlu0 %908
      %912 = vset.pattern.permute.xlu0 0
      %913 = vperm.xlu0 %912, %v875
      %v914 = vpop.permute.xlu0 %913
      %917 = vset.pattern.permute.xlu0 0
      %918 = vperm.xlu0 %917, %v876
      %v919 = vpop.permute.xlu0 %918
      %922 = vset.pattern.permute.xlu0 0
      %923 = vperm.xlu0 %922, %v877
      %v924 = vpop.permute.xlu0 %923
      %927 = vset.pattern.permute.xlu0 0
      %928 = vperm.xlu0 %927, %v878
      %v929 = vpop.permute.xlu0 %928
      %932 = vset.pattern.permute.xlu0 0
      %933 = vperm.xlu0 %932, %v879
      %v934 = vpop.permute.xlu0 %933
      %937 = vset.pattern.permute.xlu0 0
      %938 = vperm.xlu0 %937, %v880
      %v939 = vpop.permute.xlu0 %938
      %942 = vset.pattern.permute.xlu0 0
      %943 = vperm.xlu0 %942, %v881
      %v944 = vpop.permute.xlu0 %943
      %947 = vset.pattern.permute.xlu0 0
      %948 = vperm.xlu0 %947, %v882
      %v949 = vpop.permute.xlu0 %948
      %952 = vset.pattern.permute.xlu0 0
      %953 = vperm.xlu0 %952, %v883
      %v954 = vpop.permute.xlu0 %953
      %957 = vset.pattern.permute.xlu0 0
      %958 = vperm.xlu0 %957, %v884
      %v959 = vpop.permute.xlu0 %958
      %962 = vset.pattern.permute.xlu0 0
      %963 = vperm.xlu0 %962, %v885
      %v964 = vpop.permute.xlu0 %963
      %v966 = vadd.f32 %v838, %v889
      %v967 = vadd.f32 %v839, %v889
      %v968 = vadd.f32 %v840, %v894
      %v969 = vadd.f32 %v841, %v894
      %v970 = vadd.f32 %v842, %v899
      %v971 = vadd.f32 %v843, %v899
      %v972 = vadd.f32 %v844, %v904
      %v973 = vadd.f32 %v845, %v904
      %v974 = vadd.f32 %v846, %v909
      %v975 = vadd.f32 %v847, %v909
      %v976 = vadd.f32 %v848, %v914
      %v977 = vadd.f32 %v849, %v914
      %v978 = vadd.f32 %v850, %v919
      %v979 = vadd.f32 %v851, %v919
      %v980 = vadd.f32 %v852, %v924
      %v981 = vadd.f32 %v853, %v924
      %v982 = vadd.f32 %v854, %v929
      %v983 = vadd.f32 %v855, %v929
      %v984 = vadd.f32 %v856, %v934
      %v985 = vadd.f32 %v857, %v934
      %v986 = vadd.f32 %v858, %v939
      %v987 = vadd.f32 %v859, %v939
      %v988 = vadd.f32 %v860, %v944
      %v989 = vadd.f32 %v861, %v944
      %v990 = vadd.f32 %v862, %v949
      %v991 = vadd.f32 %v863, %v949
      %v992 = vadd.f32 %v864, %v954
      %v993 = vadd.f32 %v865, %v954
      %v994 = vadd.f32 %v866, %v959
      %v995 = vadd.f32 %v867, %v959
      %v996 = vadd.f32 %v868, %v964
      %v997 = vadd.f32 %v869, %v964
      %vm998 = vcmp.ge.f32.partialorder %v966, 0.0
      %vm999 = vcmp.ge.f32.partialorder %v967, 0.0
      %vm1000 = vcmp.ge.f32.partialorder %v968, 0.0
      %vm1001 = vcmp.ge.f32.partialorder %v969, 0.0
      %vm1002 = vcmp.ge.f32.partialorder %v970, 0.0
      %vm1003 = vcmp.ge.f32.partialorder %v971, 0.0
      %vm1004 = vcmp.ge.f32.partialorder %v972, 0.0
      %vm1005 = vcmp.ge.f32.partialorder %v973, 0.0
      %vm1006 = vcmp.ge.f32.partialorder %v974, 0.0
      %vm1007 = vcmp.ge.f32.partialorder %v975, 0.0
      %vm1008 = vcmp.ge.f32.partialorder %v976, 0.0
      %vm1009 = vcmp.ge.f32.partialorder %v977, 0.0
      %vm1010 = vcmp.ge.f32.partialorder %v978, 0.0
      %vm1011 = vcmp.ge.f32.partialorder %v979, 0.0
      %vm1012 = vcmp.ge.f32.partialorder %v980, 0.0
      %vm1013 = vcmp.ge.f32.partialorder %v981, 0.0
      %vm1014 = vcmp.ge.f32.partialorder %v982, 0.0
      %vm1015 = vcmp.ge.f32.partialorder %v983, 0.0
      %vm1016 = vcmp.ge.f32.partialorder %v984, 0.0
      %vm1017 = vcmp.ge.f32.partialorder %v985, 0.0
      %vm1018 = vcmp.ge.f32.partialorder %v986, 0.0
      %vm1019 = vcmp.ge.f32.partialorder %v987, 0.0
      %vm1020 = vcmp.ge.f32.partialorder %v988, 0.0
      %vm1021 = vcmp.ge.f32.partialorder %v989, 0.0
      %vm1022 = vcmp.ge.f32.partialorder %v990, 0.0
      %vm1023 = vcmp.ge.f32.partialorder %v991, 0.0
      %vm1024 = vcmp.ge.f32.partialorder %v992, 0.0
      %vm1025 = vcmp.ge.f32.partialorder %v993, 0.0
      %vm1026 = vcmp.ge.f32.partialorder %v994, 0.0
      %vm1027 = vcmp.ge.f32.partialorder %v995, 0.0
      %vm1028 = vcmp.ge.f32.partialorder %v996, 0.0
      %vm1029 = vcmp.ge.f32.partialorder %v997, 0.0
      %v1030 = vmul.f32 %v966, 0.2
      %v1031 = vmul.f32 %v967, 0.2
      %v1032 = vmul.f32 %v968, 0.2
      %v1033 = vmul.f32 %v969, 0.2
      %v1034 = vmul.f32 %v970, 0.2
      %v1035 = vmul.f32 %v971, 0.2
      %v1036 = vmul.f32 %v972, 0.2
      %v1037 = vmul.f32 %v973, 0.2
      %v1038 = vmul.f32 %v974, 0.2
      %v1039 = vmul.f32 %v975, 0.2
      %v1040 = vmul.f32 %v976, 0.2
      %v1041 = vmul.f32 %v977, 0.2
      %v1042 = vmul.f32 %v978, 0.2
      %v1043 = vmul.f32 %v979, 0.2
      %v1044 = vmul.f32 %v980, 0.2
      %v1045 = vmul.f32 %v981, 0.2
      %v1046 = vmul.f32 %v982, 0.2
      %v1047 = vmul.f32 %v983, 0.2
      %v1048 = vmul.f32 %v984, 0.2
      %v1049 = vmul.f32 %v985, 0.2
      %v1050 = vmul.f32 %v986, 0.2
      %v1051 = vmul.f32 %v987, 0.2
      %v1052 = vmul.f32 %v988, 0.2
      %v1053 = vmul.f32 %v989, 0.2
      %v1054 = vmul.f32 %v990, 0.2
      %v1055 = vmul.f32 %v991, 0.2
      %v1056 = vmul.f32 %v992, 0.2
      %v1057 = vmul.f32 %v993, 0.2
      %v1058 = vmul.f32 %v994, 0.2
      %v1059 = vmul.f32 %v995, 0.2
      %v1060 = vmul.f32 %v996, 0.2
      %v1061 = vmul.f32 %v997, 0.2
      %v1062 = vsel %vm998, %v966, %v1030
      %v1063 = vsel %vm999, %v967, %v1031
      %v1064 = vsel %vm1000, %v968, %v1032
      %v1065 = vsel %vm1001, %v969, %v1033
      %v1066 = vsel %vm1002, %v970, %v1034
      %v1067 = vsel %vm1003, %v971, %v1035
      %v1068 = vsel %vm1004, %v972, %v1036
      %v1069 = vsel %vm1005, %v973, %v1037
      %v1070 = vsel %vm1006, %v974, %v1038
      %v1071 = vsel %vm1007, %v975, %v1039
      %v1072 = vsel %vm1008, %v976, %v1040
      %v1073 = vsel %vm1009, %v977, %v1041
      %v1074 = vsel %vm1010, %v978, %v1042
      %v1075 = vsel %vm1011, %v979, %v1043
      %v1076 = vsel %vm1012, %v980, %v1044
      %v1077 = vsel %vm1013, %v981, %v1045
      %v1078 = vsel %vm1014, %v982, %v1046
      %v1079 = vsel %vm1015, %v983, %v1047
      %v1080 = vsel %vm1016, %v984, %v1048
      %v1081 = vsel %vm1017, %v985, %v1049
      %v1082 = vsel %vm1018, %v986, %v1050
      %v1083 = vsel %vm1019, %v987, %v1051
      %v1084 = vsel %vm1020, %v988, %v1052
      %v1085 = vsel %vm1021, %v989, %v1053
      %v1086 = vsel %vm1022, %v990, %v1054
      %v1087 = vsel %vm1023, %v991, %v1055
      %v1088 = vsel %vm1024, %v992, %v1056
      %v1089 = vsel %vm1025, %v993, %v1057
      %v1090 = vsel %vm1026, %v994, %v1058
      %v1091 = vsel %vm1027, %v995, %v1059
      %v1092 = vsel %vm1028, %v996, %v1060
      %v1093 = vsel %vm1029, %v997, %v1061
      %v1094 = vld [vmem:[%s6] sm:$0x1]
      %v1095 = vpack.c.bf16 %v1064, %v1062
      %v1096 = vpack.c.bf16 %v1065, %v1063
      %v1097 = vpack.c.bf16 %v1068, %v1066
      %v1098 = vpack.c.bf16 %v1069, %v1067
      %v1099 = vpack.c.bf16 %v1072, %v1070
      %v1100 = vpack.c.bf16 %v1073, %v1071
      %v1101 = vpack.c.bf16 %v1076, %v1074
      %v1102 = vpack.c.bf16 %v1077, %v1075
      %v1103 = vpack.c.bf16 %v1080, %v1078
      %v1104 = vpack.c.bf16 %v1081, %v1079
      %v1105 = vpack.c.bf16 %v1084, %v1082
      %v1106 = vpack.c.bf16 %v1085, %v1083
      %v1107 = vpack.c.bf16 %v1088, %v1086
      %v1108 = vpack.c.bf16 %v1089, %v1087
      %v1109 = vpack.c.bf16 %v1092, %v1090
      %v1110 = vpack.c.bf16 %v1093, %v1091
      %1111 = vmatprep.subr.bf16.mxu0 %v1096
      %1112 = vmatpush1.bf16.msra.mxu0 %v1095
      %1113 = vmatprep.subr.bf16.mxu0 %v1098
      %1114 = vmatpush1.bf16.msra.mxu0 %v1097
      %1115 = vmatprep.subr.bf16.mxu0 %v1100
      %1116 = vmatpush1.bf16.msra.mxu0 %v1099
      %1117 = vmatprep.subr.bf16.mxu0 %v1102
      %1118 = vmatpush1.bf16.msra.mxu0 %v1101
      %1119 = vmatprep.subr.bf16.mxu0 %v1104
      %1120 = vmatpush1.bf16.msra.mxu0 %v1103
      %1121 = vmatprep.subr.bf16.mxu0 %v1106
      %1122 = vmatpush1.bf16.msra.mxu0 %v1105
      %1123 = vmatprep.subr.bf16.mxu0 %v1108
      %1124 = vmatpush1.bf16.msra.mxu0 %v1107
      %1125 = vmatprep.subr.bf16.mxu0 %v1110
      %1126 = vmatpush1.bf16.msra.mxu0 %v1109
      %1127 = vmatprep.subr.bf16.mxu0 0
      %1128 = vmatpush1.bf16.msra.mxu0 0
      %1129 = vmatprep.subr.bf16.mxu0 0
      %1130 = vmatpush1.bf16.msra.mxu0 0
      %1131 = vmatprep.subr.bf16.mxu0 0
      %1132 = vmatpush1.bf16.msra.mxu0 0
      %1133 = vmatprep.subr.bf16.mxu0 0
      %1134 = vmatpush1.bf16.msra.mxu0 0
      %1135 = vmatprep.subr.bf16.mxu0 0
      %1136 = vmatpush1.bf16.msra.mxu0 0
      %1137 = vmatprep.subr.bf16.mxu0 0
      %1138 = vmatpush1.bf16.msra.mxu0 0
      %1139 = vmatprep.subr.bf16.mxu0 0
      %1140 = vmatpush1.bf16.msra.mxu0 0
      %1141 = vmatprep.subr.bf16.mxu0 0
      %1142 = vmatpush1.bf16.msra.mxu0 0
      %1143 = vmatprep.mubr.bf16.mxu0 0
      %1144 = vmatmul.mubr.bf16.gmra.mrb[0].mxu0 %v1094
      %v1145 = vpop.f32.mrb[0].mxu0
      %v1146 = vadd.f32 0.0, %v1145
      %v1147 = vpop.f32.mrb[0].mxu0
      %v1148 = vadd.f32 0.0, %v1147
      %v1149 = vpop.f32.mrb[0].mxu0
      %v1150 = vpop.f32.mrb[0].mxu0
      %1151 = vdwg.mxu0
      %v1154 = vcombine.low %v1146, %v1148
      %v1156 = vunpack.c.l.s4 1966171168
      %v1157 = vunpack.c.0.s8 %v1156
      %v1158 = vlaneseq
      %v1159 = vshrl.u32 %v1158, 7
      %v1160 = vsub.s32 %v1157, %v1159
      %v1161 = vrot.slane %v1154, %v1160
      %v1163 = vunpack.c.l.s4 1966171168
      %v1164 = vunpack.c.0.s8 %v1163
      %v1165 = vlaneseq
      %v1166 = vshrl.u32 %v1165, 7
      %v1167 = vsub.s32 %v1164, %v1166
      %v1168 = vrot.slane %v1161, %v1167
      %v1170 = vlaneseq
      %vm1171 = vcmp.ge.s32.totalorder %v1170, 0
      %vm1172 = vcmp.lt.s32.totalorder %v1170, 256
      %vm1173 = vmand %vm1171, %vm1172
      %1174 = vst.msk [vmem:[%s314] sm:$0x3] %vm1173, %v1168
      %s1175 = smul.u32 2, %s23
      %p1176 = scmp.lt.s32.totalorder %s22, 1
      %s1177 = scalar_select %p1176, %s22, 1
      %p1178 = scmp.lt.s32.totalorder %s1175, 1
      %s1179 = scalar_select %p1178, %s1175, 1
      %s1180 = smul.addr %s1177, 2
      %s1181 = sadd.s32 %s1179, %s1180
      %s1182 = scalar_lea.vmem %s7, %s1181
      // Predicated region
      $region49: #{pixel_discriminator_forward.3} parent=47 // pred_check
        %p1183 = pneg %p204
      $region50: #{pixel_discriminator_forward.3} parent=47 // pred_check_branch
        %1185 = sbr.rel (%p1183) target = $region52
      $region51: #{pixel_discriminator_forward.3} parent=47 // pred_region
        %s1186 = smul.u32 2, %s23
      $region52: #{pixel_discriminator_forward.3} parent=47 // pred_fallthru
        _
    $region48: #{pixel_discriminator_forward.3} parent=5 // pred_fallthru
      _
    %p1187 = scmp.le.s32.totalorder 2, %s13
    // Predicated region
    $region53: #{pixel_discriminator_forward.3} parent=5 // pred_check
      %p1188 = pneg %p1187
    $region54: #{pixel_discriminator_forward.3} parent=5 // pred_check_branch
      %1190 = sbr.rel (%p1188) target = $region56
    $region55: #{pixel_discriminator_forward.3} parent=5 // pred_region
      %s1191 = ssub.s32 %s13, 2
      // Predicated region
      $region57: #{pixel_discriminator_forward.3} parent=55 // pred_check
        %p1192 = pneg %p210
      $region58: #{pixel_discriminator_forward.3} parent=55 // pred_check_branch
        %1194 = sbr.rel (%p1192) target = $region60
      $region59: #{pixel_discriminator_forward.3} parent=55 // pred_region
        %s1195 = smul.u32 2, %s25
        %p1196 = scmp.lt.s32.totalorder %s24, 1
        %s1197 = scalar_select %p1196, %s24, 1
        %p1198 = scmp.lt.s32.totalorder %s1195, 1
        %s1199 = scalar_select %p1198, %s1195, 1
        %s1200 = smul.addr %s1197, 2
        %s1201 = sadd.s32 %s1199, %s1200
        %s1202 = scalar_lea.vmem %s7, %s1201
      $region60: #{pixel_discriminator_forward.3} parent=55 // pred_fallthru
        _
    $region56: #{pixel_discriminator_forward.3} parent=5 // pred_fallthru
      _
  $region6: #{pixel_discriminator_forward.3} parent=0 // loop_footer
    %s17 = sadd.s32 1, %s13
  $region7: #{pixel_discriminator_forward.3} parent=0 // loop_footer_branch
    %12 = sbr.rel target = $region3
  $region8: #{pixel_discriminator_forward.3} parent=0 // loop_exit
    _

// kernel: pixel_discriminator_forward.2
$region0: #{pixel_discriminator_forward.2}
  #allocation0 [shape = 'u32[]', space=smem, size = 0x4, offset = 0x4, fixed_abs, tag = 'smem constant byte address 0x4 - core index']
  #allocation1 [shape = 'u32[144,128]{1,0:T(1,128)}', space=vmem, size = 0x12000, scoped, tag = 'internal scratch']
  %s0 = inlined_call_operand.vmem [shape: f32[2,4,256], index: 0, kind: input, shape index: {}]
  %s1 = inlined_call_operand.vmem [shape: bf16[64,4], index: 1, kind: input, shape index: {}]
  %s2 = inlined_call_operand.vmem [shape: f32[64,1], index: 2, kind: input, shape index: {}]
  %s3 = inlined_call_operand.vmem [shape: bf16[128,64], index: 3, kind: input, shape index: {}]
  %s4 = inlined_call_operand.vmem [shape: f32[2,128,1], index: 4, kind: output, shape index: {0}]
  %s5 = inlined_call_operand.vmem [shape: f32[2,128,1], index: 5, kind: output, shape index: {1}]
  %6 = xla_tuple %s4, %s5
  %s7 = sld [smem:[#allocation0]]
  $region61: #{pixel_discriminator_forward.2} parent=0
    _
  %s9 = ssub.s32 1, %s7
  %s10 = scalar_select 0, %s9, %s7
  loop: start=0, step=1, limit=4
  $region2: #{pixel_discriminator_forward.2} parent=0 // loop_pre_header
    _
  $region3: #{pixel_discriminator_forward.2} parent=0 // loop_header
    %s12 = sphi 0, %s16
    %p13 = scmp.ge.s32.totalorder %s12, 4
    %s19 = sphi 0, %s31
    %s20 = sphi 0, %s27
    %s21 = sphi 0, %s19
    %s22 = sphi 0, %s20
    %s23 = sphi 0, %s21
    %s24 = sphi 0, %s22
    %s36 = sphi 0, %s38
    %s39 = sphi 0, %s36
    %s40 = sphi 0, %s39
    %s56 = sphi 0, %s40
    %s60 = sphi 0, %s60
    %s62 = sphi 0, %s60
    %s63 = sphi 0, %s62
    %s77 = sphi 0, %s63
    %s81 = sphi 0, %s81
    %s83 = sphi 0, %s81
    %s84 = sphi 0, %s83
    %s98 = sphi 0, %s84
    %s102 = sphi 0, %s102
    %s104 = sphi 0, %s102
    %s105 = sphi 0, %s104
    %s119 = sphi 0, %s105
    %s125 = sphi 0, %s127
    %s128 = sphi 0, %s125
    %s129 = sphi 0, %s128
    %s145 = sphi 0, %s129
    %s151 = sphi 0, %s153
    %s154 = sphi 0, %s151
    %s155 = sphi 0, %s154
    %s171 = sphi 0, %s155
  $region4: #{pixel_discriminator_forward.2} parent=0 // loop_header_branch
    %15 = sbr.rel (%p13) target = $region8
  $region5: #{pixel_discriminator_forward.2} parent=0 // loop_body
    %s17 = ssub.s32 %s12, 1
    %s18 = ssub.s32 %s12, 2
    %s25 = sadd.s32 1, %s20
    %p26 = scmp.ge.s32.totalorder %s25, 1
    %s27 = scalar_select %p26, 0, %s25
    %s28 = sadd.s32 1, %s19
    %s29 = scalar_select %p26, %s28, %s19
    %p30 = scmp.ge.s32.totalorder %s29, 2
    %s31 = scalar_select %p30, 0, %s29
    %s32 = ssub.s32 %s19, %s31
    %s33 = ssub.s32 %s20, %s27
    %s34 = sor.u32 %s32, %s33
    %p35 = scmp.eq.s32.totalorder %s34, 0
    %s37 = sadd.s32 %s36, 1
    %s38 = scalar_select %p35, %s36, %s37
    %p41 = pneg %p35
    %p42 = scmp.eq.s32.totalorder %s12, 1
    %p43 = por %p41, %p42
    %p44 = scmp.ne.s32.totalorder %s36, %s39
    %p45 = scmp.eq.s32.totalorder %s12, 0
    %p46 = por %p44, %p45
    %p47 = scmp.ne.s32.totalorder %s36, %s39
    %p48 = scmp.eq.s32.totalorder %s17, 1
    %p49 = por %p47, %p48
    %p50 = scmp.ne.s32.totalorder %s39, %s40
    %p51 = scmp.eq.s32.totalorder %s17, 0
    %p52 = por %p50, %p51
    %p53 = scmp.ne.s32.totalorder %s39, %s40
    %p54 = scmp.eq.s32.totalorder %s18, 1
    %p55 = por %p53, %p54
    %p57 = scmp.ne.s32.totalorder %s40, %s56
    %p58 = scmp.eq.s32.totalorder %s18, 0
    %p59 = por %p57, %p58
    %s61 = sadd.s32 %s60, 1
    %p64 = scmp.eq.s32.totalorder %s12, 1
    %p65 = scmp.ne.s32.totalorder %s60, %s62
    %p66 = scmp.eq.s32.totalorder %s12, 0
    %p67 = por %p65, %p66
    %p68 = scmp.ne.s32.totalorder %s60, %s62
    %p69 = scmp.eq.s32.totalorder %s17, 1
    %p70 = por %p68, %p69
    %p71 = scmp.ne.s32.totalorder %s62, %s63
    %p72 = scmp.eq.s32.totalorder %s17, 0
    %p73 = por %p71, %p72
    %p74 = scmp.ne.s32.totalorder %s62, %s63
    %p75 = scmp.eq.s32.totalorder %s18, 1
    %p76 = por %p74, %p75
    %p78 = scmp.ne.s32.totalorder %s63, %s77
    %p79 = scmp.eq.s32.totalorder %s18, 0
    %p80 = por %p78, %p79
    %s82 = sadd.s32 %s81, 1
    %p85 = scmp.eq.s32.totalorder %s12, 1
    %p86 = scmp.ne.s32.totalorder %s81, %s83
    %p87 = scmp.eq.s32.totalorder %s12, 0
    %p88 = por %p86, %p87
    %p89 = scmp.ne.s32.totalorder %s81, %s83
    %p90 = scmp.eq.s32.totalorder %s17, 1
    %p91 = por %p89, %p90
    %p92 = scmp.ne.s32.totalorder %s83, %s84
    %p93 = scmp.eq.s32.totalorder %s17, 0
    %p94 = por %p92, %p93
    %p95 = scmp.ne.s32.totalorder %s83, %s84
    %p96 = scmp.eq.s32.totalorder %s18, 1
    %p97 = por %p95, %p96
    %p99 = scmp.ne.s32.totalorder %s84, %s98
    %p100 = scmp.eq.s32.totalorder %s18, 0
    %p101 = por %p99, %p100
    %s103 = sadd.s32 %s102, 1
    %p106 = scmp.eq.s32.totalorder %s12, 1
    %p107 = scmp.ne.s32.totalorder %s102, %s104
    %p108 = scmp.eq.s32.totalorder %s12, 0
    %p109 = por %p107, %p108
    %p110 = scmp.ne.s32.totalorder %s102, %s104
    %p111 = scmp.eq.s32.totalorder %s17, 1
    %p112 = por %p110, %p111
    %p113 = scmp.ne.s32.totalorder %s104, %s105
    %p114 = scmp.eq.s32.totalorder %s17, 0
    %p115 = por %p113, %p114
    %p116 = scmp.ne.s32.totalorder %s104, %s105
    %p117 = scmp.eq.s32.totalorder %s18, 1
    %p118 = por %p116, %p117
    %p120 = scmp.ne.s32.totalorder %s105, %s119
    %p121 = scmp.eq.s32.totalorder %s18, 0
    %p122 = por %p120, %p121
    %s123 = ssub.s32 %s19, %s31
    %p124 = scmp.eq.s32.totalorder %s123, 0
    %s126 = sadd.s32 %s125, 1
    %s127 = scalar_select %p124, %s125, %s126
    %p130 = pneg %p124
    %p131 = scmp.eq.s32.totalorder %s12, 1
    %p132 = por %p130, %p131
    %p133 = scmp.ne.s32.totalorder %s125, %s128
    %p134 = scmp.eq.s32.totalorder %s12, 0
    %p135 = por %p133, %p134
    %p136 = scmp.ne.s32.totalorder %s125, %s128
    %p137 = scmp.eq.s32.totalorder %s17, 1
    %p138 = por %p136, %p137
    %p139 = scmp.ne.s32.totalorder %s128, %s129
    %p140 = scmp.eq.s32.totalorder %s17, 0
    %p141 = por %p139, %p140
    %p142 = scmp.ne.s32.totalorder %s128, %s129
    %p143 = scmp.eq.s32.totalorder %s18, 1
    %p144 = por %p142, %p143
    %p146 = scmp.ne.s32.totalorder %s129, %s145
    %p147 = scmp.eq.s32.totalorder %s18, 0
    %p148 = por %p146, %p147
    %s149 = ssub.s32 %s19, %s31
    %p150 = scmp.eq.s32.totalorder %s149, 0
    %s152 = sadd.s32 %s151, 1
    %s153 = scalar_select %p150, %s151, %s152
    %p156 = pneg %p150
    %p157 = scmp.eq.s32.totalorder %s12, 1
    %p158 = por %p156, %p157
    %p159 = scmp.ne.s32.totalorder %s151, %s154
    %p160 = scmp.eq.s32.totalorder %s12, 0
    %p161 = por %p159, %p160
    %p162 = scmp.ne.s32.totalorder %s151, %s154
    %p163 = scmp.eq.s32.totalorder %s17, 1
    %p164 = por %p162, %p163
    %p165 = scmp.ne.s32.totalorder %s154, %s155
    %p166 = scmp.eq.s32.totalorder %s17, 0
    %p167 = por %p165, %p166
    %p168 = scmp.ne.s32.totalorder %s154, %s155
    %p169 = scmp.eq.s32.totalorder %s18, 1
    %p170 = por %p168, %p169
    %p172 = scmp.ne.s32.totalorder %s155, %s171
    %p173 = scmp.eq.s32.totalorder %s18, 0
    %p174 = por %p172, %p173
    %p175 = scmp.le.s32.totalorder 1, %s12
    %p176 = scmp.lt.s32.totalorder %s12, 3
    %p177 = pnand %p175, %p176
    %p178 = pneg %p177
    // Predicated region
    $region9: #{pixel_discriminator_forward.2} parent=5 // pred_check
      _
    $region10: #{pixel_discriminator_forward.2} parent=5 // pred_check_branch
      %180 = sbr.rel (%p177) target = $region12
    $region11: #{pixel_discriminator_forward.2} parent=5 // pred_region
      %s181 = ssub.s32 %s12, 1
      // Predicated region
      $region13: #{pixel_discriminator_forward.2} parent=11 // pred_check
        %p182 = pneg %p73
      $region14: #{pixel_discriminator_forward.2} parent=11 // pred_check_branch
        %184 = sbr.rel (%p182) target = $region16
      $region15: #{pixel_discriminator_forward.2} parent=11 // pred_region
        _
      $region16: #{pixel_discriminator_forward.2} parent=11 // pred_fallthru
        _
      // Predicated region
      $region17: #{pixel_discriminator_forward.2} parent=11 // pred_check
        %p185 = pneg %p94
      $region18: #{pixel_discriminator_forward.2} parent=11 // pred_check_branch
        %187 = sbr.rel (%p185) target = $region20
      $region19: #{pixel_discriminator_forward.2} parent=11 // pred_region
        _
      $region20: #{pixel_discriminator_forward.2} parent=11 // pred_fallthru
        _
      // Predicated region
      $region21: #{pixel_discriminator_forward.2} parent=11 // pred_check
        %p188 = pneg %p115
      $region22: #{pixel_discriminator_forward.2} parent=11 // pred_check_branch
        %190 = sbr.rel (%p188) target = $region24
      $region23: #{pixel_discriminator_forward.2} parent=11 // pred_region
        _
      $region24: #{pixel_discriminator_forward.2} parent=11 // pred_fallthru
        _
    $region12: #{pixel_discriminator_forward.2} parent=5 // pred_fallthru
      _
    %p191 = scmp.lt.s32.totalorder %s12, 2
    // Predicated region
    $region25: #{pixel_discriminator_forward.2} parent=5 // pred_check
      %p192 = pneg %p191
    $region26: #{pixel_discriminator_forward.2} parent=5 // pred_check_branch
      %194 = sbr.rel (%p192) target = $region28
    $region27: #{pixel_discriminator_forward.2} parent=5 // pred_region
      // Predicated region
      $region29: #{pixel_discriminator_forward.2} parent=27 // pred_check
        %p195 = pneg %p46
      $region30: #{pixel_discriminator_forward.2} parent=27 // pred_check_branch
        %197 = sbr.rel (%p195) target = $region32
      $region31: #{pixel_discriminator_forward.2} parent=27 // pred_region
        %s198 = smul.u32 2, %s20
        %p199 = scmp.lt.s32.totalorder %s19, 1
        %s200 = scalar_select %p199, %s19, 1
        %p201 = scmp.lt.s32.totalorder %s198, 1
        %s202 = scalar_select %p201, %s198, 1
        %s203 = smul.addr %s200, 2
        %s204 = sadd.s32 %s202, %s203
        %s205 = smul.addr %s204, 4
        %s206 = scalar_lea.vmem %s0, %s205
        %s207 = smul.u32 2, %s20
      $region32: #{pixel_discriminator_forward.2} parent=27 // pred_fallthru
        _
    $region28: #{pixel_discriminator_forward.2} parent=5 // pred_fallthru
      _
    %p208 = scmp.le.s32.totalorder 1, %s12
    %p209 = scmp.lt.s32.totalorder %s12, 3
    %p210 = pnand %p208, %p209
    %p211 = pneg %p210
    // Predicated region
    $region33: #{pixel_discriminator_forward.2} parent=5 // pred_check
      _
    $region34: #{pixel_discriminator_forward.2} parent=5 // pred_check_branch
      %213 = sbr.rel (%p210) target = $region36
    $region35: #{pixel_discriminator_forward.2} parent=5 // pred_region
      %s214 = ssub.s32 %s12, 1
      %s215 = smul.u32 2, %s22
      %p216 = scmp.lt.s32.totalorder %s21, 1
      %s217 = scalar_select %p216, %s21, 1
      %p218 = scmp.lt.s32.totalorder %s215, 1
      %s219 = scalar_select %p218, %s215, 1
      %s220 = smul.addr %s217, 2
      %s221 = sadd.s32 %s219, %s220
      %s222 = smul.addr %s221, 4
      %s223 = scalar_lea.vmem %s0, %s222
      %p224 = pneg %p52
      %p225 = pneg %p49
      %p226 = pneg %p73
      %p227 = pneg %p70
      %p228 = pneg %p94
      %p229 = pneg %p91
      %p230 = pneg %p115
      %p231 = pneg %p112
      %p232 = pneg %p141
      %p233 = pneg %p138
      %p234 = scmp.lt.s32.totalorder %s21, 1
      %s235 = scalar_select %p234, %s21, 1
      %s236 = smul.addr %s235, 16
      %s237 = smul.addr %s236, 8
      %s238 = scalar_lea.vmem %s4, %s237
      %p239 = pneg %p167
      %p240 = pneg %p164
      %p241 = scmp.lt.s32.totalorder %s21, 1
      %s242 = scalar_select %p241, %s21, 1
      %s243 = smul.addr %s242, 16
      %s244 = smul.addr %s243, 8
      %s245 = scalar_lea.vmem %s5, %s244
      %s246 = smul.u32 2, %s22
      %p247 = scmp.lt.s32.totalorder %s21, 1
      %s248 = scalar_select %p247, %s21, 1
      %p249 = scmp.lt.s32.totalorder %s246, 1
      %s250 = scalar_select %p249, %s246, 1
      %s251 = smul.addr %s248, 2
      %s252 = sadd.s32 %s250, %s251
      %s253 = smul.addr %s252, 4
      %s254 = scalar_lea.vmem %s0, %s253
      %s255 = smul.u32 2, %s22
      %p256 = scmp.lt.s32.totalorder %s21, 1
      %s257 = scalar_select %p256, %s21, 1
      %s258 = smul.addr %s257, 16
      %s259 = smul.addr %s258, 8
      %s260 = scalar_lea.vmem %s4, %s259
      %p261 = scmp.lt.s32.totalorder %s21, 1
      %s262 = scalar_select %p261, %s21, 1
      %s263 = smul.addr %s262, 16
      %s264 = smul.addr %s263, 8
      %s265 = scalar_lea.vmem %s5, %s264
      %v267 = vld [vmem:[%s254] sm:$0xff]
      %v269 = vcombine.high %v267, %v267
      %v271 = vpack.c.bf16 %v267, %v267
      %v272 = vpack.c.bf16 %v269, %v269
      %v273 = vld [vmem:[%s1] sm:$0xf]
      %v274 = vld [vmem:[%s1 + $0x4] sm:$0xf]
      %v275 = vld [vmem:[%s1 + $0x8] sm:$0xf]
      %v276 = vld [vmem:[%s1 + $0xc] sm:$0xf]
      %v277 = vld [vmem:[%s1 + $0x10] sm:$0xf]
      %v278 = vld [vmem:[%s1 + $0x14] sm:$0xf]
      %v279 = vld [vmem:[%s1 + $0x18] sm:$0xf]
      %v280 = vld [vmem:[%s1 + $0x1c] sm:$0xf]
      %v281 = vld [vmem:[%s2] sm:$0xff]
      %v282 = vld [vmem:[%s2 + $0x8] sm:$0xff]
      %v283 = vld [vmem:[%s2 + $0x10] sm:$0xff]
      %v284 = vld [vmem:[%s2 + $0x18] sm:$0xff]
      %v285 = vld [vmem:[%s2 + $0x20] sm:$0xff]
      %v286 = vld [vmem:[%s2 + $0x28] sm:$0xff]
      %v287 = vld [vmem:[%s2 + $0x30] sm:$0xff]
      %v288 = vld [vmem:[%s2 + $0x38] sm:$0xff]
      %290 = vset.pattern.permute.xlu0 0
      %291 = vperm.xlu0 %290, %v281
      %v292 = vpop.permute.xlu0 %291
      %295 = vset.pattern.permute.xlu0 0
      %296 = vperm.xlu0 %295, %v282
      %v297 = vpop.permute.xlu0 %296
      %300 = vset.pattern.permute.xlu0 0
      %301 = vperm.xlu0 %300, %v283
      %v302 = vpop.permute.xlu0 %301
      %305 = vset.pattern.permute.xlu0 0
      %306 = vperm.xlu0 %305, %v284
      %v307 = vpop.permute.xlu0 %306
      %310 = vset.pattern.permute.xlu0 0
      %311 = vperm.xlu0 %310, %v285
      %v312 = vpop.permute.xlu0 %311
      %315 = vset.pattern.permute.xlu0 0
      %316 = vperm.xlu0 %315, %v286
      %v317 = vpop.permute.xlu0 %316
      %320 = vset.pattern.permute.xlu0 0
      %321 = vperm.xlu0 %320, %v287
      %v322 = vpop.permute.xlu0 %321
      %325 = vset.pattern.permute.xlu0 0
      %326 = vperm.xlu0 %325, %v288
      %v327 = vpop.permute.xlu0 %326
      %v337 = vunpack.c.l.b16 %v273
      %v338 = vunpack.c.l.b16 %v274
      %v339 = vunpack.c.l.b16 %v275
      %v340 = vunpack.c.l.b16 %v276
      %v341 = vunpack.c.l.b16 %v277
      %v342 = vunpack.c.l.b16 %v278
      %v343 = vunpack.c.l.b16 %v279
      %v344 = vunpack.c.l.b16 %v280
      %v345 = vpack.c.b16 %v338, %v337
      %v346 = vpack.c.b16 %v340, %v339
      %v347 = vpack.c.b16 %v342, %v341
      %v348 = vpack.c.b16 %v344, %v343
      %vm349 = vcmask 31744
      %v351 = vsel %vm349, %v345, 0
      %v354 = vsel %vm349, %v346, 0
      %v357 = vsel %vm349, %v347, 0
      %v360 = vsel %vm349, %v348, 0
      %vm362 = vcmask 1041408
      %v364 = vsel %vm362, %v271, 0
      %v367 = vsel %vm362, %v272, 0
      %369 = vmatprep.subr.bf16.mxu0 %v367
      %370 = vmatpush1.bf16.msra.mxu0 %v364
      %371 = vmatprep.subr.bf16.mxu0 0
      %372 = vmatpush1.bf16.msra.mxu0 0
      %373 = vmatprep.subr.bf16.mxu0 0
      %374 = vmatpush1.bf16.msra.mxu0 0
      %375 = vmatprep.subr.bf16.mxu0 0
      %376 = vmatpush1.bf16.msra.mxu0 0
      %377 = vmatprep.subr.bf16.mxu0 0
      %378 = vmatpush1.bf16.msra.mxu0 0
      %379 = vmatprep.subr.bf16.mxu0 0
      %380 = vmatpush1.bf16.msra.mxu0 0
      %381 = vmatprep.subr.bf16.mxu0 0
      %382 = vmatpush1.bf16.msra.mxu0 0
      %383 = vmatprep.subr.bf16.mxu0 0
      %384 = vmatpush1.bf16.msra.mxu0 0
      %385 = vmatprep.subr.bf16.mxu0 0
      %386 = vmatpush1.bf16.msra.mxu0 0
      %387 = vmatprep.subr.bf16.mxu0 0
      %388 = vmatpush1.bf16.msra.mxu0 0
      %389 = vmatprep.subr.bf16.mxu0 0
      %390 = vmatpush1.bf16.msra.mxu0 0
      %391 = vmatprep.subr.bf16.mxu0 0
      %392 = vmatpush1.bf16.msra.mxu0 0
      %393 = vmatprep.subr.bf16.mxu0 0
      %394 = vmatpush1.bf16.msra.mxu0 0
      %395 = vmatprep.subr.bf16.mxu0 0
      %396 = vmatpush1.bf16.msra.mxu0 0
      %397 = vmatprep.subr.bf16.mxu0 0
      %398 = vmatpush1.bf16.msra.mxu0 0
      %399 = vmatprep.subr.bf16.mxu0 0
      %400 = vmatpush1.bf16.msra.mxu0 0
      %401 = vmatprep.mubr.bf16.mxu0 0
      %402 = vmatmul.mubr.bf16.gmra.mrb[0].mxu0 %v351
      %v403 = vpop.f32.mrb[0].mxu0
      %v404 = vadd.f32 %v292, %v403
      %v405 = vpop.f32.mrb[0].mxu0
      %v406 = vadd.f32 %v292, %v405
      %v407 = vpop.f32.mrb[0].mxu0
      %v408 = vadd.f32 %v297, %v407
      %v409 = vpop.f32.mrb[0].mxu0
      %v410 = vadd.f32 %v297, %v409
      %411 = vmatprep.mubr.bf16.mxu0 0
      %412 = vmatmul.mubr.bf16.gmra.mrb[0].mxu0 %v354
      %v413 = vpop.f32.mrb[0].mxu0
      %v414 = vadd.f32 %v302, %v413
      %v415 = vpop.f32.mrb[0].mxu0
      %v416 = vadd.f32 %v302, %v415
      %v417 = vpop.f32.mrb[0].mxu0
      %v418 = vadd.f32 %v307, %v417
      %v419 = vpop.f32.mrb[0].mxu0
      %v420 = vadd.f32 %v307, %v419
      %421 = vmatprep.mubr.bf16.mxu0 0
      %422 = vmatmul.mubr.bf16.gmra.mrb[0].mxu0 %v357
      %v423 = vpop.f32.mrb[0].mxu0
      %v424 = vadd.f32 %v312, %v423
      %v425 = vpop.f32.mrb[0].mxu0
      %v426 = vadd.f32 %v312, %v425
      %v427 = vpop.f32.mrb[0].mxu0
      %v428 = vadd.f32 %v317, %v427
      %v429 = vpop.f32.mrb[0].mxu0
      %v430 = vadd.f32 %v317, %v429
      %431 = vmatprep.mubr.bf16.mxu0 0
      %432 = vmatmul.mubr.bf16.gmra.mrb[0].mxu0 %v360
      %v433 = vpop.f32.mrb[0].mxu0
      %v434 = vadd.f32 %v322, %v433
      %v435 = vpop.f32.mrb[0].mxu0
      %v436 = vadd.f32 %v322, %v435
      %v437 = vpop.f32.mrb[0].mxu0
      %v438 = vadd.f32 %v327, %v437
      %v439 = vpop.f32.mrb[0].mxu0
      %v440 = vadd.f32 %v327, %v439
      %441 = vdwg.mxu0
      %vm442 = vcmp.ge.f32.partialorder %v404, 0.0
      %vm443 = vcmp.ge.f32.partialorder %v406, 0.0
      %vm444 = vcmp.ge.f32.partialorder %v408, 0.0
      %vm445 = vcmp.ge.f32.partialorder %v410, 0.0
      %vm446 = vcmp.ge.f32.partialorder %v414, 0.0
      %vm447 = vcmp.ge.f32.partialorder %v416, 0.0
      %vm448 = vcmp.ge.f32.partialorder %v418, 0.0
      %vm449 = vcmp.ge.f32.partialorder %v420, 0.0
      %vm450 = vcmp.ge.f32.partialorder %v424, 0.0
      %vm451 = vcmp.ge.f32.partialorder %v426, 0.0
      %vm452 = vcmp.ge.f32.partialorder %v428, 0.0
      %vm453 = vcmp.ge.f32.partialorder %v430, 0.0
      %vm454 = vcmp.ge.f32.partialorder %v434, 0.0
      %vm455 = vcmp.ge.f32.partialorder %v436, 0.0
      %vm456 = vcmp.ge.f32.partialorder %v438, 0.0
      %vm457 = vcmp.ge.f32.partialorder %v440, 0.0
      %v458 = vmul.f32 %v404, 0.2
      %v459 = vmul.f32 %v406, 0.2
      %v460 = vmul.f32 %v408, 0.2
      %v461 = vmul.f32 %v410, 0.2
      %v462 = vmul.f32 %v414, 0.2
      %v463 = vmul.f32 %v416, 0.2
      %v464 = vmul.f32 %v418, 0.2
      %v465 = vmul.f32 %v420, 0.2
      %v466 = vmul.f32 %v424, 0.2
      %v467 = vmul.f32 %v426, 0.2
      %v468 = vmul.f32 %v428, 0.2
      %v469 = vmul.f32 %v430, 0.2
      %v470 = vmul.f32 %v434, 0.2
      %v471 = vmul.f32 %v436, 0.2
      %v472 = vmul.f32 %v438, 0.2
      %v473 = vmul.f32 %v440, 0.2
      %v474 = vsel %vm442, %v404, %v458
      %v475 = vsel %vm443, %v406, %v459
      %v476 = vsel %vm444, %v408, %v460
      %v477 = vsel %vm445, %v410, %v461
      %v478 = vsel %vm446, %v414, %v462
      %v479 = vsel %vm447, %v416, %v463
      %v480 = vsel %vm448, %v418, %v464
      %v481 = vsel %vm449, %v420, %v465
      %v482 = vsel %vm450, %v424, %v466
      %v483 = vsel %vm451, %v426, %v467
      %v484 = vsel %vm452, %v428, %v468
      %v485 = vsel %vm453, %v430, %v469
      %v486 = vsel %vm454, %v434, %v470
      %v487 = vsel %vm455, %v436, %v471
      %v488 = vsel %vm456, %v438, %v472
      %v489 = vsel %vm457, %v440, %v473
      %v490 = vld [vmem:[%s3] sm:$0xf]
      %v491 = vld [vmem:[%s3 + $0x4] sm:$0xf]
      %v492 = vld [vmem:[%s3 + $0x8] sm:$0xf]
      %v493 = vld [vmem:[%s3 + $0xc] sm:$0xf]
      %v494 = vld [vmem:[%s3 + $0x10] sm:$0xf]
      %v495 = vld [vmem:[%s3 + $0x14] sm:$0xf]
      %v496 = vld [vmem:[%s3 + $0x18] sm:$0xf]
      %v497 = vld [vmem:[%s3 + $0x1c] sm:$0xf]
      %v498 = vld [vmem:[%s3 + $0x20] sm:$0xf]
      %v499 = vld [vmem:[%s3 + $0x24] sm:$0xf]
      %v500 = vld [vmem:[%s3 + $0x28] sm:$0xf]
      %v501 = vld [vmem:[%s3 + $0x2c] sm:$0xf]
      %v502 = vld [vmem:[%s3 + $0x30] sm:$0xf]
      %v503 = vld [vmem:[%s3 + $0x34] sm:$0xf]
      %v504 = vld [vmem:[%s3 + $0x38] sm:$0xf]
      %v505 = vld [vmem:[%s3 + $0x3c] sm:$0xf]
      %v506 = vpack.c.bf16 %v476, %v474
      %v507 = vpack.c.bf16 %v477, %v475
      %v508 = vpack.c.bf16 %v480, %v478
      %v509 = vpack.c.bf16 %v481, %v479
      %v510 = vpack.c.bf16 %v484, %v482
      %v511 = vpack.c.bf16 %v485, %v483
      %v512 = vpack.c.bf16 %v488, %v486
      %v513 = vpack.c.bf16 %v489, %v487
      %v530 = vunpack.c.l.b16 %v490
      %v531 = vunpack.c.l.b16 %v491
      %v532 = vunpack.c.l.b16 %v492
      %v533 = vunpack.c.l.b16 %v493
      %v534 = vunpack.c.l.b16 %v494
      %v535 = vunpack.c.l.b16 %v495
      %v536 = vunpack.c.l.b16 %v496
      %v537 = vunpack.c.l.b16 %v497
      %v538 = vunpack.c.l.b16 %v498
      %v539 = vunpack.c.l.b16 %v499
      %v540 = vunpack.c.l.b16 %v500
      %v541 = vunpack.c.l.b16 %v501
      %v542 = vunpack.c.l.b16 %v502
      %v543 = vunpack.c.l.b16 %v503
      %v544 = vunpack.c.l.b16 %v504
      %v545 = vunpack.c.l.b16 %v505
      %v546 = vpack.c.b16 %v531, %v530
      %v547 = vpack.c.b16 %v533, %v532
      %v548 = vpack.c.b16 %v535, %v534
      %v549 = vpack.c.b16 %v537, %v536
      %v550 = vpack.c.b16 %v539, %v538
      %v551 = vpack.c.b16 %v541, %v540
      %v552 = vpack.c.b16 %v543, %v542
      %v553 = vpack.c.b16 %v545, %v544
      %vm554 = vcmask 523264
      %v556 = vsel %vm554, %v546, 0
      %v559 = vsel %vm554, %v547, 0
      %v562 = vsel %vm554, %v548, 0
      %v565 = vsel %vm554, %v549, 0
      %v568 = vsel %vm554, %v550, 0
      %v571 = vsel %vm554, %v551, 0
      %v574 = vsel %vm554, %v552, 0
      %v577 = vsel %vm554, %v553, 0
      %579 = vmatprep.subr.bf16.mxu0 %v507
      %580 = vmatpush1.bf16.msra.mxu0 %v506
      %581 = vmatprep.subr.bf16.mxu0 %v509
      %582 = vmatpush1.bf16.msra.mxu0 %v508
      %583 = vmatprep.subr.bf16.mxu0 %v511
      %584 = vmatpush1.bf16.msra.mxu0 %v510
      %585 = vmatprep.subr.bf16.mxu0 %v513
      %586 = vmatpush1.bf16.msra.mxu0 %v512
      %587 = vmatprep.subr.bf16.mxu0 0
      %588 = vmatpush1.bf16.msra.mxu0 0
      %589 = vmatprep.subr.bf16.mxu0 0
      %590 = vmatpush1.bf16.msra.mxu0 0
      %591 = vmatprep.subr.bf16.mxu0 0
      %592 = vmatpush1.bf16.msra.mxu0 0
      %593 = vmatprep.subr.bf16.mxu0 0
      %594 = vmatpush1.bf16.msra.mxu0 0
      %595 = vmatprep.subr.bf16.mxu0 0
      %596 = vmatpush1.bf16.msra.mxu0 0
      %597 = vmatprep.subr.bf16.mxu0 0
      %598 = vmatpush1.bf16.msra.mxu0 0
      %599 = vmatprep.subr.bf16.mxu0 0
      %600 = vmatpush1.bf16.msra.mxu0 0
      %601 = vmatprep.subr.bf16.mxu0 0
      %602 = vmatpush1.bf16.msra.mxu0 0
      %603 = vmatprep.subr.bf16.mxu0 0
      %604 = vmatpush1.bf16.msra.mxu0 0
      %605 = vmatprep.subr.bf16.mxu0 0
      %606 = vmatpush1.bf16.msra.mxu0 0
      %607 = vmatprep.subr.bf16.mxu0 0
      %608 = vmatpush1.bf16.msra.mxu0 0
      %609 = vmatprep.subr.bf16.mxu0 0
      %610 = vmatpush1.bf16.msra.mxu0 0
      %611 = vmatprep.mubr.bf16.mxu0 0
      %612 = vmatmul.mubr.bf16.gmra.mrb[0].mxu0 %v556
      %v613 = vpop.f32.mrb[0].mxu0
      %v614 = vadd.f32 0.0, %v613
      %v615 = vpop.f32.mrb[0].mxu0
      %v616 = vadd.f32 0.0, %v615
      %v617 = vpop.f32.mrb[0].mxu0
      %v618 = vadd.f32 0.0, %v617
      %v619 = vpop.f32.mrb[0].mxu0
      %v620 = vadd.f32 0.0, %v619
      %621 = vmatprep.mubr.bf16.mxu0 0
      %622 = vmatmul.mubr.bf16.gmra.mrb[0].mxu0 %v559
      %v623 = vpop.f32.mrb[0].mxu0
      %v624 = vadd.f32 0.0, %v623
      %v625 = vpop.f32.mrb[0].mxu0
      %v626 = vadd.f32 0.0, %v625
      %v627 = vpop.f32.mrb[0].mxu0
      %v628 = vadd.f32 0.0, %v627
      %v629 = vpop.f32.mrb[0].mxu0
      %v630 = vadd.f32 0.0, %v629
      %631 = vmatprep.mubr.bf16.mxu0 0
      %632 = vmatmul.mubr.bf16.gmra.mrb[0].mxu0 %v562
      %v633 = vpop.f32.mrb[0].mxu0
      %v634 = vadd.f32 0.0, %v633
      %v635 = vpop.f32.mrb[0].mxu0
      %v636 = vadd.f32 0.0, %v635
      %v637 = vpop.f32.mrb[0].mxu0
      %v638 = vadd.f32 0.0, %v637
      %v639 = vpop.f32.mrb[0].mxu0
      %v640 = vadd.f32 0.0, %v639
      %641 = vmatprep.mubr.bf16.mxu0 0
      %642 = vmatmul.mubr.bf16.gmra.mrb[0].mxu0 %v565
      %v643 = vpop.f32.mrb[0].mxu0
      %v644 = vadd.f32 0.0, %v643
      %v645 = vpop.f32.mrb[0].mxu0
      %v646 = vadd.f32 0.0, %v645
      %v647 = vpop.f32.mrb[0].mxu0
      %v648 = vadd.f32 0.0, %v647
      %v649 = vpop.f32.mrb[0].mxu0
      %v650 = vadd.f32 0.0, %v649
      %651 = vmatprep.mubr.bf16.mxu0 0
      %652 = vmatmul.mubr.bf16.gmra.mrb[0].mxu0 %v568
      %v653 = vpop.f32.mrb[0].mxu0
      %v654 = vadd.f32 0.0, %v653
      %v655 = vpop.f32.mrb[0].mxu0
      %v656 = vadd.f32 0.0, %v655
      %v657 = vpop.f32.mrb[0].mxu0
      %v658 = vadd.f32 0.0, %v657
      %v659 = vpop.f32.mrb[0].mxu0
      %v660 = vadd.f32 0.0, %v659
      %661 = vmatprep.mubr.bf16.mxu0 0
      %662 = vmatmul.mubr.bf16.gmra.mrb[0].mxu0 %v571
      %v663 = vpop.f32.mrb[0].mxu0
      %v664 = vadd.f32 0.0, %v663
      %v665 = vpop.f32.mrb[0].mxu0
      %v666 = vadd.f32 0.0, %v665
      %v667 = vpop.f32.mrb[0].mxu0
      %v668 = vadd.f32 0.0, %v667
      %v669 = vpop.f32.mrb[0].mxu0
      %v670 = vadd.f32 0.0, %v669
      %671 = vmatprep.mubr.bf16.mxu0 0
      %672 = vmatmul.mubr.bf16.gmra.mrb[0].mxu0 %v574
      %v673 = vpop.f32.mrb[0].mxu0
      %v674 = vadd.f32 0.0, %v673
      %v675 = vpop.f32.mrb[0].mxu0
      %v676 = vadd.f32 0.0, %v675
      %v677 = vpop.f32.mrb[0].mxu0
      %v678 = vadd.f32 0.0, %v677
      %v679 = vpop.f32.mrb[0].mxu0
      %v680 = vadd.f32 0.0, %v679
      %681 = vmatprep.mubr.bf16.mxu0 0
      %682 = vmatmul.mubr.bf16.gmra.mrb[0].mxu0 %v577
      %v683 = vpop.f32.mrb[0].mxu0
      %v684 = vadd.f32 0.0, %v683
      %v685 = vpop.f32.mrb[0].mxu0
      %v686 = vadd.f32 0.0, %v685
      %v687 = vpop.f32.mrb[0].mxu0
      %v688 = vadd.f32 0.0, %v687
      %v689 = vpop.f32.mrb[0].mxu0
      %v690 = vadd.f32 0.0, %v689
      %691 = vdwg.mxu0
      %v692 = vadd.f32 %v614, %v616
      %693 = vadd.xlane.f32.xlu0 %v692
      %v694 = vpop.xlane.xlu0 %693
      %v695 = vadd.f32 %v618, %v620
      %696 = vadd.xlane.f32.xlu0 %v695
      %v697 = vpop.xlane.xlu0 %696
      %v698 = vadd.f32 %v624, %v626
      %699 = vadd.xlane.f32.xlu0 %v698
      %v700 = vpop.xlane.xlu0 %699
      %v701 = vadd.f32 %v628, %v630
      %702 = vadd.xlane.f32.xlu0 %v701
      %v703 = vpop.xlane.xlu0 %702
      %v704 = vadd.f32 %v634, %v636
      %705 = vadd.xlane.f32.xlu0 %v704
      %v706 = vpop.xlane.xlu0 %705
      %v707 = vadd.f32 %v638, %v640
      %708 = vadd.xlane.f32.xlu0 %v707
      %v709 = vpop.xlane.xlu0 %708
      %v710 = vadd.f32 %v644, %v646
      %711 = vadd.xlane.f32.xlu0 %v710
      %v712 = vpop.xlane.xlu0 %711
      %v713 = vadd.f32 %v648, %v650
      %714 = vadd.xlane.f32.xlu0 %v713
      %v715 = vpop.xlane.xlu0 %714
      %v716 = vadd.f32 %v654, %v656
      %717 = vadd.xlane.f32.xlu0 %v716
      %v718 = vpop.xlane.xlu0 %717
      %v719 = vadd.f32 %v658, %v660
      %720 = vadd.xlane.f32.xlu0 %v719
      %v721 = vpop.xlane.xlu0 %720
      %v722 = vadd.f32 %v664, %v666
      %723 = vadd.xlane.f32.xlu0 %v722
      %v724 = vpop.xlane.xlu0 %723
      %v725 = vadd.f32 %v668, %v670
      %726 = vadd.xlane.f32.xlu0 %v725
      %v727 = vpop.xlane.xlu0 %726
      %v728 = vadd.f32 %v674, %v676
      %729 = vadd.xlane.f32.xlu0 %v728
      %v730 = vpop.xlane.xlu0 %729
      %v731 = vadd.f32 %v678, %v680
      %732 = vadd.xlane.f32.xlu0 %v731
      %v733 = vpop.xlane.xlu0 %732
      %v734 = vadd.f32 %v684, %v686
      %735 = vadd.xlane.f32.xlu0 %v734
      %v736 = vpop.xlane.xlu0 %735
      %v737 = vadd.f32 %v688, %v690
      %738 = vadd.xlane.f32.xlu0 %v737
      %v739 = vpop.xlane.xlu0 %738
      %v740 = vmul.f32 %v614, %v614
      %v741 = vmul.f32 %v616, %v616
      %v742 = vmul.f32 %v618, %v618
      %v743 = vmul.f32 %v620, %v620
      %v744 = vmul.f32 %v624, %v624
      %v745 = vmul.f32 %v626, %v626
      %v746 = vmul.f32 %v628, %v628
      %v747 = vmul.f32 %v630, %v630
      %v748 = vmul.f32 %v634, %v634
      %v749 = vmul.f32 %v636, %v636
      %v750 = vmul.f32 %v638, %v638
      %v751 = vmul.f32 %v640, %v640
      %v752 = vmul.f32 %v644, %v644
      %v753 = vmul.f32 %v646, %v646
      %v754 = vmul.f32 %v648, %v648
      %v755 = vmul.f32 %v650, %v650
      %v756 = vmul.f32 %v654, %v654
      %v757 = vmul.f32 %v656, %v656
      %v758 = vmul.f32 %v658, %v658
      %v759 = vmul.f32 %v660, %v660
      %v760 = vmul.f32 %v664, %v664
      %v761 = vmul.f32 %v666, %v666
      %v762 = vmul.f32 %v668, %v668
      %v763 = vmul.f32 %v670, %v670
      %v764 = vmul.f32 %v674, %v674
      %v765 = vmul.f32 %v676, %v676
      %v766 = vmul.f32 %v678, %v678
      %v767 = vmul.f32 %v680, %v680
      %v768 = vmul.f32 %v684, %v684
      %v769 = vmul.f32 %v686, %v686
      %v770 = vmul.f32 %v688, %v688
      %v771 = vmul.f32 %v690, %v690
      %v772 = vadd.f32 %v740, %v741
      %773 = vadd.xlane.f32.xlu0 %v772
      %v774 = vpop.xlane.xlu0 %773
      %v775 = vadd.f32 %v742, %v743
      %776 = vadd.xlane.f32.xlu0 %v775
      %v777 = vpop.xlane.xlu0 %776
      %v778 = vadd.f32 %v744, %v745
      %779 = vadd.xlane.f32.xlu0 %v778
      %v780 = vpop.xlane.xlu0 %779
      %v781 = vadd.f32 %v746, %v747
      %782 = vadd.xlane.f32.xlu0 %v781
      %v783 = vpop.xlane.xlu0 %782
      %v784 = vadd.f32 %v748, %v749
      %785 = vadd.xlane.f32.xlu0 %v784
      %v786 = vpop.xlane.xlu0 %785
      %v787 = vadd.f32 %v750, %v751
      %788 = vadd.xlane.f32.xlu0 %v787
      %v789 = vpop.xlane.xlu0 %788
      %v790 = vadd.f32 %v752, %v753
      %791 = vadd.xlane.f32.xlu0 %v790
      %v792 = vpop.xlane.xlu0 %791
      %v793 = vadd.f32 %v754, %v755
      %794 = vadd.xlane.f32.xlu0 %v793
      %v795 = vpop.xlane.xlu0 %794
      %v796 = vadd.f32 %v756, %v757
      %797 = vadd.xlane.f32.xlu0 %v796
      %v798 = vpop.xlane.xlu0 %797
      %v799 = vadd.f32 %v758, %v759
      %800 = vadd.xlane.f32.xlu0 %v799
      %v801 = vpop.xlane.xlu0 %800
      %v802 = vadd.f32 %v760, %v761
      %803 = vadd.xlane.f32.xlu0 %v802
      %v804 = vpop.xlane.xlu0 %803
      %v805 = vadd.f32 %v762, %v763
      %806 = vadd.xlane.f32.xlu0 %v805
      %v807 = vpop.xlane.xlu0 %806
      %v808 = vadd.f32 %v764, %v765
      %809 = vadd.xlane.f32.xlu0 %v808
      %v810 = vpop.xlane.xlu0 %809
      %v811 = vadd.f32 %v766, %v767
      %812 = vadd.xlane.f32.xlu0 %v811
      %v813 = vpop.xlane.xlu0 %812
      %v814 = vadd.f32 %v768, %v769
      %815 = vadd.xlane.f32.xlu0 %v814
      %v816 = vpop.xlane.xlu0 %815
      %v817 = vadd.f32 %v770, %v771
      %818 = vadd.xlane.f32.xlu0 %v817
      %v819 = vpop.xlane.xlu0 %818
      %p820 = scmp.eq.s32.totalorder %s22, 0
      // Predicated region
      $region37: #{pixel_discriminator_forward.2} parent=35 // pred_check
        %p821 = pneg %p820
      $region38: #{pixel_discriminator_forward.2} parent=35 // pred_check_branch
        %823 = sbr.rel (%p821) target = $region40
      $region39: #{pixel_discriminator_forward.2} parent=35 // pred_region
        %vm824 = vcmask 7168
        %825 = vst.msk [vmem:[%s260] sm:$0xff] %vm824, 0.0
        %826 = vst.msk [vmem:[%s260 + $0x8] sm:$0xff] %vm824, 0.0
        %827 = vst.msk [vmem:[%s260 + $0x10] sm:$0xff] %vm824, 0.0
        %828 = vst.msk [vmem:[%s260 + $0x18] sm:$0xff] %vm824, 0.0
        %829 = vst.msk [vmem:[%s260 + $0x20] sm:$0xff] %vm824, 0.0
        %830 = vst.msk [vmem:[%s260 + $0x28] sm:$0xff] %vm824, 0.0
        %831 = vst.msk [vmem:[%s260 + $0x30] sm:$0xff] %vm824, 0.0
        %832 = vst.msk [vmem:[%s260 + $0x38] sm:$0xff] %vm824, 0.0
        %833 = vst.msk [vmem:[%s260 + $0x40] sm:$0xff] %vm824, 0.0
        %834 = vst.msk [vmem:[%s260 + $0x48] sm:$0xff] %vm824, 0.0
        %835 = vst.msk [vmem:[%s260 + $0x50] sm:$0xff] %vm824, 0.0
        %836 = vst.msk [vmem:[%s260 + $0x58] sm:$0xff] %vm824, 0.0
        %837 = vst.msk [vmem:[%s260 + $0x60] sm:$0xff] %vm824, 0.0
        %838 = vst.msk [vmem:[%s260 + $0x68] sm:$0xff] %vm824, 0.0
        %839 = vst.msk [vmem:[%s260 + $0x70] sm:$0xff] %vm824, 0.0
        %840 = vst.msk [vmem:[%s260 + $0x78] sm:$0xff] %vm824, 0.0
        %841 = vst.msk [vmem:[%s265] sm:$0xff] %vm824, 0.0
        %842 = vst.msk [vmem:[%s265 + $0x8] sm:$0xff] %vm824, 0.0
        %843 = vst.msk [vmem:[%s265 + $0x10] sm:$0xff] %vm824, 0.0
        %844 = vst.msk [vmem:[%s265 + $0x18] sm:$0xff] %vm824, 0.0
        %845 = vst.msk [vmem:[%s265 + $0x20] sm:$0xff] %vm824, 0.0
        %846 = vst.msk [vmem:[%s265 + $0x28] sm:$0xff] %vm824, 0.0
        %847 = vst.msk [vmem:[%s265 + $0x30] sm:$0xff] %vm824, 0.0
        %848 = vst.msk [vmem:[%s265 + $0x38] sm:$0xff] %vm824, 0.0
        %849 = vst.msk [vmem:[%s265 + $0x40] sm:$0xff] %vm824, 0.0
        %850 = vst.msk [vmem:[%s265 + $0x48] sm:$0xff] %vm824, 0.0
        %851 = vst.msk [vmem:[%s265 + $0x50] sm:$0xff] %vm824, 0.0
        %852 = vst.msk [vmem:[%s265 + $0x58] sm:$0xff] %vm824, 0.0
        %853 = vst.msk [vmem:[%s265 + $0x60] sm:$0xff] %vm824, 0.0
        %854 = vst.msk [vmem:[%s265 + $0x68] sm:$0xff] %vm824, 0.0
        %855 = vst.msk [vmem:[%s265 + $0x70] sm:$0xff] %vm824, 0.0
        %856 = vst.msk [vmem:[%s265 + $0x78] sm:$0xff] %vm824, 0.0
      $region40: #{pixel_discriminator_forward.2} parent=35 // pred_fallthru
        _
      %v857 = vld [vmem:[%s260] sm:$0xff]
      %v858 = vld [vmem:[%s260 + $0x8] sm:$0xff]
      %v859 = vld [vmem:[%s260 + $0x10] sm:$0xff]
      %v860 = vld [vmem:[%s260 + $0x18] sm:$0xff]
      %v861 = vld [vmem:[%s260 + $0x20] sm:$0xff]
      %v862 = vld [vmem:[%s260 + $0x28] sm:$0xff]
      %v863 = vld [vmem:[%s260 + $0x30] sm:$0xff]
      %v864 = vld [vmem:[%s260 + $0x38] sm:$0xff]
      %v865 = vld [vmem:[%s260 + $0x40] sm:$0xff]
      %v866 = vld [vmem:[%s260 + $0x48] sm:$0xff]
      %v867 = vld [vmem:[%s260 + $0x50] sm:$0xff]
      %v868 = vld [vmem:[%s260 + $0x58] sm:$0xff]
      %v869 = vld [vmem:[%s260 + $0x60] sm:$0xff]
      %v870 = vld [vmem:[%s260 + $0x68] sm:$0xff]
      %v871 = vld [vmem:[%s260 + $0x70] sm:$0xff]
      %v872 = vld [vmem:[%s260 + $0x78] sm:$0xff]
      %v873 = vadd.f32 %v857, %v694
      %v874 = vadd.f32 %v858, %v697
      %v875 = vadd.f32 %v859, %v700
      %v876 = vadd.f32 %v860, %v703
      %v877 = vadd.f32 %v861, %v706
      %v878 = vadd.f32 %v862, %v709
      %v879 = vadd.f32 %v863, %v712
      %v880 = vadd.f32 %v864, %v715
      %v881 = vadd.f32 %v865, %v718
      %v882 = vadd.f32 %v866, %v721
      %v883 = vadd.f32 %v867, %v724
      %v884 = vadd.f32 %v868, %v727
      %v885 = vadd.f32 %v869, %v730
      %v886 = vadd.f32 %v870, %v733
      %v887 = vadd.f32 %v871, %v736
      %v888 = vadd.f32 %v872, %v739
      %vm889 = vcmask 7168
      %890 = vst.msk [vmem:[%s260] sm:$0xff] %vm889, %v873
      %891 = vst.msk [vmem:[%s260 + $0x8] sm:$0xff] %vm889, %v874
      %892 = vst.msk [vmem:[%s260 + $0x10] sm:$0xff] %vm889, %v875
      %893 = vst.msk [vmem:[%s260 + $0x18] sm:$0xff] %vm889, %v876
      %894 = vst.msk [vmem:[%s260 + $0x20] sm:$0xff] %vm889, %v877
      %895 = vst.msk [vmem:[%s260 + $0x28] sm:$0xff] %vm889, %v878
      %896 = vst.msk [vmem:[%s260 + $0x30] sm:$0xff] %vm889, %v879
      %897 = vst.msk [vmem:[%s260 + $0x38] sm:$0xff] %vm889, %v880
      %898 = vst.msk [vmem:[%s260 + $0x40] sm:$0xff] %vm889, %v881
      %899 = vst.msk [vmem:[%s260 + $0x48] sm:$0xff] %vm889, %v882
      %900 = vst.msk [vmem:[%s260 + $0x50] sm:$0xff] %vm889, %v883
      %901 = vst.msk [vmem:[%s260 + $0x58] sm:$0xff] %vm889, %v884
      %902 = vst.msk [vmem:[%s260 + $0x60] sm:$0xff] %vm889, %v885
      %903 = vst.msk [vmem:[%s260 + $0x68] sm:$0xff] %vm889, %v886
      %904 = vst.msk [vmem:[%s260 + $0x70] sm:$0xff] %vm889, %v887
      %905 = vst.msk [vmem:[%s260 + $0x78] sm:$0xff] %vm889, %v888
      %v906 = vld [vmem:[%s265] sm:$0xff]
      %v907 = vld [vmem:[%s265 + $0x8] sm:$0xff]
      %v908 = vld [vmem:[%s265 + $0x10] sm:$0xff]
      %v909 = vld [vmem:[%s265 + $0x18] sm:$0xff]
      %v910 = vld [vmem:[%s265 + $0x20] sm:$0xff]
      %v911 = vld [vmem:[%s265 + $0x28] sm:$0xff]
      %v912 = vld [vmem:[%s265 + $0x30] sm:$0xff]
      %v913 = vld [vmem:[%s265 + $0x38] sm:$0xff]
      %v914 = vld [vmem:[%s265 + $0x40] sm:$0xff]
      %v915 = vld [vmem:[%s265 + $0x48] sm:$0xff]
      %v916 = vld [vmem:[%s265 + $0x50] sm:$0xff]
      %v917 = vld [vmem:[%s265 + $0x58] sm:$0xff]
      %v918 = vld [vmem:[%s265 + $0x60] sm:$0xff]
      %v919 = vld [vmem:[%s265 + $0x68] sm:$0xff]
      %v920 = vld [vmem:[%s265 + $0x70] sm:$0xff]
      %v921 = vld [vmem:[%s265 + $0x78] sm:$0xff]
      %v922 = vadd.f32 %v906, %v774
      %v923 = vadd.f32 %v907, %v777
      %v924 = vadd.f32 %v908, %v780
      %v925 = vadd.f32 %v909, %v783
      %v926 = vadd.f32 %v910, %v786
      %v927 = vadd.f32 %v911, %v789
      %v928 = vadd.f32 %v912, %v792
      %v929 = vadd.f32 %v913, %v795
      %v930 = vadd.f32 %v914, %v798
      %v931 = vadd.f32 %v915, %v801
      %v932 = vadd.f32 %v916, %v804
      %v933 = vadd.f32 %v917, %v807
      %v934 = vadd.f32 %v918, %v810
      %v935 = vadd.f32 %v919, %v813
      %v936 = vadd.f32 %v920, %v816
      %v937 = vadd.f32 %v921, %v819
      %938 = vst.msk [vmem:[%s265] sm:$0xff] %vm889, %v922
      %939 = vst.msk [vmem:[%s265 + $0x8] sm:$0xff] %vm889, %v923
      %940 = vst.msk [vmem:[%s265 + $0x10] sm:$0xff] %vm889, %v924
      %941 = vst.msk [vmem:[%s265 + $0x18] sm:$0xff] %vm889, %v925
      %942 = vst.msk [vmem:[%s265 + $0x20] sm:$0xff] %vm889, %v926
      %943 = vst.msk [vmem:[%s265 + $0x28] sm:$0xff] %vm889, %v927
      %944 = vst.msk [vmem:[%s265 + $0x30] sm:$0xff] %vm889, %v928
      %945 = vst.msk [vmem:[%s265 + $0x38] sm:$0xff] %vm889, %v929
      %946 = vst.msk [vmem:[%s265 + $0x40] sm:$0xff] %vm889, %v930
      %947 = vst.msk [vmem:[%s265 + $0x48] sm:$0xff] %vm889, %v931
      %948 = vst.msk [vmem:[%s265 + $0x50] sm:$0xff] %vm889, %v932
      %949 = vst.msk [vmem:[%s265 + $0x58] sm:$0xff] %vm889, %v933
      %950 = vst.msk [vmem:[%s265 + $0x60] sm:$0xff] %vm889, %v934
      %951 = vst.msk [vmem:[%s265 + $0x68] sm:$0xff] %vm889, %v935
      %952 = vst.msk [vmem:[%s265 + $0x70] sm:$0xff] %vm889, %v936
      %953 = vst.msk [vmem:[%s265 + $0x78] sm:$0xff] %vm889, %v937
      %p954 = scmp.lt.s32.totalorder %s21, 1
      %s955 = scalar_select %p954, %s21, 1
      %s956 = smul.addr %s955, 16
      %s957 = smul.addr %s956, 8
      %s958 = scalar_lea.vmem %s4, %s957
      %p959 = scmp.lt.s32.totalorder %s21, 1
      %s960 = scalar_select %p959, %s21, 1
      %s961 = smul.addr %s960, 16
      %s962 = smul.addr %s961, 8
      %s963 = scalar_lea.vmem %s5, %s962
      // Predicated region
      $region41: #{pixel_discriminator_forward.2} parent=35 // pred_check
        %p964 = pneg %p138
      $region42: #{pixel_discriminator_forward.2} parent=35 // pred_check_branch
        %966 = sbr.rel (%p964) target = $region44
      $region43: #{pixel_discriminator_forward.2} parent=35 // pred_region
        _
      $region44: #{pixel_discriminator_forward.2} parent=35 // pred_fallthru
        _
      // Predicated region
      $region45: #{pixel_discriminator_forward.2} parent=35 // pred_check
        %p967 = pneg %p164
      $region46: #{pixel_discriminator_forward.2} parent=35 // pred_check_branch
        %969 = sbr.rel (%p967) target = $region48
      $region47: #{pixel_discriminator_forward.2} parent=35 // pred_region
        _
      $region48: #{pixel_discriminator_forward.2} parent=35 // pred_fallthru
        _
    $region36: #{pixel_discriminator_forward.2} parent=5 // pred_fallthru
      _
    %p970 = scmp.le.s32.totalorder 2, %s12
    // Predicated region
    $region49: #{pixel_discriminator_forward.2} parent=5 // pred_check
      %p971 = pneg %p970
    $region50: #{pixel_discriminator_forward.2} parent=5 // pred_check_branch
      %973 = sbr.rel (%p971) target = $region52
    $region51: #{pixel_discriminator_forward.2} parent=5 // pred_region
      %s974 = ssub.s32 %s12, 2
      // Predicated region
      $region53: #{pixel_discriminator_forward.2} parent=51 // pred_check
        %p975 = pneg %p144
      $region54: #{pixel_discriminator_forward.2} parent=51 // pred_check_branch
        %977 = sbr.rel (%p975) target = $region56
      $region55: #{pixel_discriminator_forward.2} parent=51 // pred_region
        %p978 = scmp.lt.s32.totalorder %s23, 1
        %s979 = scalar_select %p978, %s23, 1
        %s980 = smul.addr %s979, 16
        %s981 = smul.addr %s980, 8
        %s982 = scalar_lea.vmem %s4, %s981
      $region56: #{pixel_discriminator_forward.2} parent=51 // pred_fallthru
        _
      // Predicated region
      $region57: #{pixel_discriminator_forward.2} parent=51 // pred_check
        %p983 = pneg %p170
      $region58: #{pixel_discriminator_forward.2} parent=51 // pred_check_branch
        %985 = sbr.rel (%p983) target = $region60
      $region59: #{pixel_discriminator_forward.2} parent=51 // pred_region
        %p986 = scmp.lt.s32.totalorder %s23, 1
        %s987 = scalar_select %p986, %s23, 1
        %s988 = smul.addr %s987, 16
        %s989 = smul.addr %s988, 8
        %s990 = scalar_lea.vmem %s5, %s989
      $region60: #{pixel_discriminator_forward.2} parent=51 // pred_fallthru
        _
    $region52: #{pixel_discriminator_forward.2} parent=5 // pred_fallthru
      _
  $region6: #{pixel_discriminator_forward.2} parent=0 // loop_footer
    %s16 = sadd.s32 1, %s12
  $region7: #{pixel_discriminator_forward.2} parent=0 // loop_footer_branch
    %11 = sbr.rel target = $region3
  $region8: #{pixel_discriminator_forward.2} parent=0 // loop_exit
    _

</llo_original>
